<compile_context>
chip_gen: v5e
topology: v5e:2x2
jax: 0.10.0
libtpu: 0.0.40
codegen_flags: <defaults>
</compile_context>

<pallas_src>
import functools

import jax
import jax.numpy as jnp
from jax.experimental import pallas as pl
from jax.experimental.pallas import tpu as pltpu


def _linear_attn_ffn_kernel(x_ref, wkvq_ref, wo_ref, w1_ref, w2_ref,
                            seg_ref, segt_ref, p_ref, o_ref, *, eps):
    C = wo_ref.shape[0]
    F = w1_ref.shape[0]
    HW = x_ref.shape[1]
    dt = wkvq_ref.dtype                       # bf16: MXU-native matmul dtype

    x = x_ref[...].astype(jnp.float32)        # (C, HW), lane-dense (HW == 256)

    # Packed per-channel parameter table: one f32 column per vector.
    p = p_ref[...]                            # (max(2C+1, F, C), 8)
    g1, be1 = p[:C, 0:1], p[:C, 1:2]          # GN1 gamma / beta        (C, 1)
    b_kvq = p[:2 * C + 1, 2:3]                # fused [k|v|q] bias      (2C+1, 1)
    b_o = p[:C, 3:4]                          # out_proj bias           (C, 1)
    g2, be2 = p[:C, 4:5], p[:C, 5:6]          # GN2 gamma / beta        (C, 1)
    b_f1 = p[:F, 6:7]                         # FFN fc1 bias            (F, 1)
    b_f2 = p[:C, 7:8]                         # FFN fc2 bias            (C, 1)

    inv_n = 1.0 / float(C * HW)

    def group_norm(z, gamma, beta):
        # GroupNorm(num_groups=1): stats over the whole (C, HW) slab.
        # Single-pass stats: sum and sum-of-squares reduce independently.
        s1 = jnp.sum(jnp.sum(z, axis=1, keepdims=True), axis=0, keepdims=True)
        s2 = jnp.sum(jnp.sum(z * z, axis=1, keepdims=True), axis=0, keepdims=True)
        mu = s1 * inv_n
        var = s2 * inv_n - mu * mu
        scale = jax.lax.rsqrt(var + eps) * gamma          # (C, 1)
        return (z - mu) * scale + beta

    seg = seg_ref[...]                        # (HW, H): sums each W-long segment
    segt = segt_ref[...]                      # (H, HW): broadcasts back over W

    # ---------- attention branch: x + out_proj(linear_attn(GN1(x))) ----------
    y = group_norm(x, g1, be1)
    kvq = jnp.dot(wkvq_ref[...], y.astype(dt),
                  preferred_element_type=jnp.float32) + b_kvq   # (2C+1, HW) f32
    k = kvq[:C, :]                                              # (C, HW)
    v = kvq[C:2 * C, :]                                         # (C, HW)
    q = kvq[2 * C:, :]                                          # (1, HW)

    # Softmax over each W-long row segment of the flattened HW axis.  Global-max
    # stabilization is mathematically identical to the per-row max; division is
    # exact (per review note on approximate reciprocals in the softmax).
    e = jnp.exp(q - jnp.max(q, axis=1, keepdims=True))          # (1, HW)
    denom = jnp.dot(e.astype(dt), seg,
                    preferred_element_type=jnp.float32)         # (1, H)
    num = jnp.dot((k * e).astype(dt), seg,
                  preferred_element_type=jnp.float32)           # (C, H)
    ctx = jnp.dot((num / denom).astype(dt), segt,
                  preferred_element_type=jnp.float32)           # (C, HW)

    attn_in = jnp.maximum(v, 0.0) * ctx                         # relu(v) * ctx
    attn = jnp.dot(wo_ref[...], attn_in.astype(dt),
                   preferred_element_type=jnp.float32) + b_o    # (C, HW)
    x1 = x + attn                                               # residual 1

    # ---------- FFN branch: x1 + fc2(SiLU(fc1(GN2(x1)))) ----------
    y2 = group_norm(x1, g2, be2)
    h = jnp.dot(w1_ref[...], y2.astype(dt),
                preferred_element_type=jnp.float32) + b_f1      # (F, HW)
    h = 0.5 * h * (1.0 + jnp.tanh(0.5 * h))                     # SiLU, tanh form
    ffn = jnp.dot(w2_ref[...], h.astype(dt),
                  preferred_element_type=jnp.float32) + b_f2    # (C, HW)

    o_ref[...] = (x1 + ffn).astype(o_ref.dtype)                 # residual 2


def pack_params(gn1_g, gn1_b, w_qkv, b_qkv, w_out, b_out,
                gn2_g, gn2_b, w_fc1, b_fc1, w_fc2, b_fc2, H, W):
    """One-time constant packing (call once at init; reuse every forward)."""
    C = w_out.shape[0]
    F_dim = w_fc1.shape[0]
    HW = H * W
    wdt = jnp.bfloat16

    # Fused qkv weight, rows reordered [k | v | q] so in-kernel slices are
    # C-aligned.  NCHW conv1x1 weights need no transpose in this layout.
    w_kvq = jnp.concatenate([w_qkv[1:1 + C], w_qkv[1 + C:], w_qkv[:1]], axis=0)
    b_kvq = jnp.concatenate([b_qkv[1:1 + C], b_qkv[1 + C:], b_qkv[:1]], axis=0)

    # 0/1 segment matrices for "sum over each W-long segment" and the inverse
    # broadcast (the softmax / context-sum of LinearSelfAttention).
    p_idx = jnp.arange(HW)
    h_idx = jnp.arange(H)
    seg = (p_idx[:, None] // W == h_idx[None, :]).astype(wdt)    # (HW, H)
    segt = jnp.transpose(seg)                                    # (H, HW)

    # Per-channel parameter table (f32), one column per vector.
    rows = max(2 * C + 1, F_dim, C)
    cols = [gn1_g, gn1_b, b_kvq, b_out, gn2_g, gn2_b, b_f1 := b_fc1, b_fc2]
    params = jnp.zeros((rows, len(cols)), jnp.float32)
    for i, vec in enumerate(cols):
        params = params.at[:vec.shape[0], i].set(vec.astype(jnp.float32))

    return dict(w_kvq=w_kvq.astype(wdt), w_o=w_out.astype(wdt),
                w1=w_fc1.astype(wdt), w2=w_fc2.astype(wdt),
                seg=seg, segt=segt, params=params)


@jax.jit
def linear_attn_ffn(x, packed):
    B, C, H, W = x.shape
    HW = H * W
    xb = x.reshape(B, C, HW)            # contiguous dim merge: no data movement

    kernel = functools.partial(_linear_attn_ffn_kernel, eps=1e-5)

    def _const(shape):
        return pl.BlockSpec(shape, lambda b: (0,) * len(shape))

    out = pl.pallas_call(
        kernel,
        out_shape=jax.ShapeDtypeStruct((B, C, HW), x.dtype),
        grid=(B,),
        in_specs=[
            pl.BlockSpec((None, C, HW), lambda b: (b, 0, 0)),
            _const(packed["w_kvq"].shape),
            _const(packed["w_o"].shape),
            _const(packed["w1"].shape),
            _const(packed["w2"].shape),
            _const(packed["seg"].shape),
            _const(packed["segt"].shape),
            _const(packed["params"].shape),
        ],
        out_specs=pl.BlockSpec((None, C, HW), lambda b: (b, 0, 0)),
        compiler_params=pltpu.CompilerParams(
            dimension_semantics=("parallel",)),
    )(xb, packed["w_kvq"], packed["w_o"], packed["w1"], packed["w2"],
      packed["seg"], packed["segt"], packed["params"])

    return out.reshape(B, C, H, W)      # still NCHW: free metadata reshape


def reference(x, gn1_g, gn1_b, w_qkv, b_qkv, w_out, b_out,
              gn2_g, gn2_b, w_fc1, b_fc1, w_fc2, b_fc2, C):
    # Pure-JAX replica of the PyTorch LinearAttnFFN forward (NCHW).
    def gn(z, g, b, eps=1e-5):
        mu = jnp.mean(z, axis=(1, 2, 3), keepdims=True)
        var = jnp.mean(jnp.square(z - mu), axis=(1, 2, 3), keepdims=True)
        return (z - mu) / jnp.sqrt(var + eps) * g[None, :, None, None] \
            + b[None, :, None, None]

    def conv1x1(z, w, b):
        return jnp.einsum('oc,bchw->bohw', w, z) + b[None, :, None, None]

    def attn(z):
        qkv = conv1x1(z, w_qkv, b_qkv)
        q, k, v = qkv[:, :1], qkv[:, 1:1 + C], qkv[:, 1 + C:]
        scores = jax.nn.softmax(q, axis=-1)
        ctx = jnp.sum(k * scores, axis=-1, keepdims=True)
        return conv1x1(jax.nn.relu(v) * ctx, w_out, b_out)

    def ffn(z):
        h = conv1x1(z, w_fc1, b_fc1)
        h = h * jax.nn.sigmoid(h)
        return conv1x1(h, w_fc2, b_fc2)

    x = x + attn(gn(x, gn1_g, gn1_b))
    x = x + ffn(gn(x, gn2_g, gn2_b))
    return x


if __name__ == "__main__":
    B, C, H, W = 2, 32, 16, 16          # embed_dim = 32
    F_dim = 64                          # ffn_latent_dim = 64
    key = jax.random.PRNGKey(0)
    ks = jax.random.split(key, 14)

    x = jax.random.normal(ks[0], (B, C, H, W), jnp.float32)

    gn1_g = 1.0 + 0.1 * jax.random.normal(ks[1], (C,), jnp.float32)
    gn1_b = 0.1 * jax.random.normal(ks[2], (C,), jnp.float32)
    gn2_g = 1.0 + 0.1 * jax.random.normal(ks[3], (C,), jnp.float32)
    gn2_b = 0.1 * jax.random.normal(ks[4], (C,), jnp.float32)

    bnd = 1.0 / (C ** 0.5)
    w_qkv = jax.random.uniform(ks[5], (1 + 2 * C, C), jnp.float32, -bnd, bnd)
    b_qkv = jax.random.uniform(ks[6], (1 + 2 * C,), jnp.float32, -bnd, bnd)
    w_out = jax.random.uniform(ks[7], (C, C), jnp.float32, -bnd, bnd)
    b_out = jax.random.uniform(ks[8], (C,), jnp.float32, -bnd, bnd)
    w_fc1 = jax.random.uniform(ks[9], (F_dim, C), jnp.float32, -bnd, bnd)
    b_fc1 = jax.random.uniform(ks[10], (F_dim,), jnp.float32, -bnd, bnd)
    bnd2 = 1.0 / (F_dim ** 0.5)
    w_fc2 = jax.random.uniform(ks[11], (C, F_dim), jnp.float32, -bnd2, bnd2)
    b_fc2 = jax.random.uniform(ks[12], (C,), jnp.float32, -bnd2, bnd2)

    # One-time packing (hoisted out of the forward path).
    packed = pack_params(gn1_g, gn1_b, w_qkv, b_qkv, w_out, b_out,
                         gn2_g, gn2_b, w_fc1, b_fc1, w_fc2, b_fc2, H, W)
    packed = jax.tree_util.tree_map(jax.block_until_ready, packed)

    out = linear_attn_ffn(x, packed)
    out = jax.block_until_ready(out)

    ref = reference(x, gn1_g, gn1_b, w_qkv, b_qkv, w_out, b_out,
                    gn2_g, gn2_b, w_fc1, b_fc1, w_fc2, b_fc2, C)

    assert out.shape == (B, C, H, W)
    # bf16 matmul inputs (f32 accumulation) -> 2e-2 tolerance.
    assert jnp.allclose(out, ref, rtol=2e-2, atol=2e-2), "mismatch vs reference"

    print("KERNEL_OK")
</pallas_src>

<mosaic_0001>
module attributes {stable_mosaic.version = 11 : i64} {
  func.func @_linear_attn_ffn_kernel(%arg0: i32, %arg1: memref<1x32x256xf32, #tpu.memory_space<vmem>>, %arg2: memref<65x32xbf16, #tpu.memory_space<vmem>>, %arg3: memref<32x32xbf16, #tpu.memory_space<vmem>>, %arg4: memref<64x32xbf16, #tpu.memory_space<vmem>>, %arg5: memref<32x64xbf16, #tpu.memory_space<vmem>>, %arg6: memref<256x16xbf16, #tpu.memory_space<vmem>>, %arg7: memref<16x256xbf16, #tpu.memory_space<vmem>>, %arg8: memref<65x8xf32, #tpu.memory_space<vmem>>, %arg9: memref<1x32x256xf32, #tpu.memory_space<vmem>>) attributes {dimension_semantics = [#tpu.dimension_semantics<parallel>], iteration_bounds = array<i64: 2>, scalar_prefetch = 0 : i64, scratch_operands = 0 : i64, tpu.core_type = #tpu.core_type<tc>, window_params = [{transform_indices = @transform_0, window_bounds = array<i64: 1, 32, 256>}, {pipeline_mode = #tpu.pipeline_mode<synchronous>, transform_indices = @transform_1, window_bounds = array<i64: 65, 32>}, {pipeline_mode = #tpu.pipeline_mode<synchronous>, transform_indices = @transform_2, window_bounds = array<i64: 32, 32>}, {pipeline_mode = #tpu.pipeline_mode<synchronous>, transform_indices = @transform_3, window_bounds = array<i64: 64, 32>}, {pipeline_mode = #tpu.pipeline_mode<synchronous>, transform_indices = @transform_4, window_bounds = array<i64: 32, 64>}, {pipeline_mode = #tpu.pipeline_mode<synchronous>, transform_indices = @transform_5, window_bounds = array<i64: 256, 16>}, {pipeline_mode = #tpu.pipeline_mode<synchronous>, transform_indices = @transform_6, window_bounds = array<i64: 16, 256>}, {pipeline_mode = #tpu.pipeline_mode<synchronous>, transform_indices = @transform_7, window_bounds = array<i64: 65, 8>}, {transform_indices = @transform_8, window_bounds = array<i64: 1, 32, 256>}]} {
    %c0 = arith.constant 0 : index
    %c0_0 = arith.constant 0 : index
    %c0_1 = arith.constant 0 : index
    %0 = vector.load %arg1[%c0, %c0_0, %c0_1] : memref<1x32x256xf32, #tpu.memory_space<vmem>>, vector<1x32x256xf32>
    %1 = vector.shape_cast %0 : vector<1x32x256xf32> to vector<32x256xf32>
    %c0_2 = arith.constant 0 : index
    %c0_3 = arith.constant 0 : index
    %2 = vector.load %arg8[%c0_2, %c0_3] : memref<65x8xf32, #tpu.memory_space<vmem>>, vector<65x8xf32>
    %3 = vector.extract_strided_slice %2 {offsets = [0, 0], sizes = [32, 1], strides = [1, 1]} : vector<65x8xf32> to vector<32x1xf32>
    %4 = vector.extract_strided_slice %2 {offsets = [0, 1], sizes = [32, 1], strides = [1, 1]} : vector<65x8xf32> to vector<32x1xf32>
    %5 = vector.extract_strided_slice %2 {offsets = [0, 2], sizes = [65, 1], strides = [1, 1]} : vector<65x8xf32> to vector<65x1xf32>
    %6 = vector.extract_strided_slice %2 {offsets = [0, 3], sizes = [32, 1], strides = [1, 1]} : vector<65x8xf32> to vector<32x1xf32>
    %7 = vector.extract_strided_slice %2 {offsets = [0, 4], sizes = [32, 1], strides = [1, 1]} : vector<65x8xf32> to vector<32x1xf32>
    %8 = vector.extract_strided_slice %2 {offsets = [0, 5], sizes = [32, 1], strides = [1, 1]} : vector<65x8xf32> to vector<32x1xf32>
    %9 = vector.extract_strided_slice %2 {offsets = [0, 6], sizes = [64, 1], strides = [1, 1]} : vector<65x8xf32> to vector<64x1xf32>
    %10 = vector.extract_strided_slice %2 {offsets = [0, 7], sizes = [32, 1], strides = [1, 1]} : vector<65x8xf32> to vector<32x1xf32>
    %c0_4 = arith.constant 0 : index
    %c0_5 = arith.constant 0 : index
    %11 = vector.load %arg6[%c0_4, %c0_5] : memref<256x16xbf16, #tpu.memory_space<vmem>>, vector<256x16xbf16>
    %c0_6 = arith.constant 0 : index
    %c0_7 = arith.constant 0 : index
    %12 = vector.load %arg7[%c0_6, %c0_7] : memref<16x256xbf16, #tpu.memory_space<vmem>>, vector<16x256xbf16>
    %cst = arith.constant dense<0.000000e+00> : vector<32xf32>
    %13 = vector.multi_reduction <add>, %1, %cst [1] : vector<32x256xf32> to vector<32xf32>
    %14 = vector.shape_cast %13 : vector<32xf32> to vector<32x1xf32>
    %cst_8 = arith.constant dense<0.000000e+00> : vector<1xf32>
    %15 = vector.multi_reduction <add>, %14, %cst_8 [0] : vector<32x1xf32> to vector<1xf32>
    %16 = vector.shape_cast %15 : vector<1xf32> to vector<1x1xf32>
    %17 = arith.mulf %1, %1 : vector<32x256xf32>
    %cst_9 = arith.constant dense<0.000000e+00> : vector<32xf32>
    %18 = vector.multi_reduction <add>, %17, %cst_9 [1] : vector<32x256xf32> to vector<32xf32>
    %19 = vector.shape_cast %18 : vector<32xf32> to vector<32x1xf32>
    %cst_10 = arith.constant dense<0.000000e+00> : vector<1xf32>
    %20 = vector.multi_reduction <add>, %19, %cst_10 [0] : vector<32x1xf32> to vector<1xf32>
    %21 = vector.shape_cast %20 : vector<1xf32> to vector<1x1xf32>
    %cst_11 = arith.constant 1.22070313E-4 : f32
    %22 = vector.broadcast %cst_11 : f32 to vector<1x1xf32>
    %23 = arith.mulf %16, %22 : vector<1x1xf32>
    %cst_12 = arith.constant 1.22070313E-4 : f32
    %24 = vector.broadcast %cst_12 : f32 to vector<1x1xf32>
    %25 = arith.mulf %21, %24 : vector<1x1xf32>
    %26 = arith.mulf %23, %23 : vector<1x1xf32>
    %27 = arith.subf %25, %26 : vector<1x1xf32>
    %cst_13 = arith.constant 9.99999974E-6 : f32
    %28 = vector.broadcast %cst_13 : f32 to vector<1x1xf32>
    %29 = arith.addf %27, %28 : vector<1x1xf32>
    %30 = math.rsqrt %29 : vector<1x1xf32>
    %31 = vector.broadcast %30 : vector<1x1xf32> to vector<32x1xf32>
    %32 = arith.mulf %31, %3 : vector<32x1xf32>
    %33 = vector.broadcast %23 : vector<1x1xf32> to vector<32x256xf32>
    %34 = arith.subf %1, %33 : vector<32x256xf32>
    %35 = vector.broadcast %32 : vector<32x1xf32> to vector<32x256xf32>
    %36 = arith.mulf %34, %35 : vector<32x256xf32>
    %37 = vector.broadcast %4 : vector<32x1xf32> to vector<32x256xf32>
    %38 = arith.addf %36, %37 : vector<32x256xf32>
    %c0_14 = arith.constant 0 : index
    %c0_15 = arith.constant 0 : index
    %39 = vector.load %arg2[%c0_14, %c0_15] : memref<65x32xbf16, #tpu.memory_space<vmem>>, vector<65x32xbf16>
    %40 = arith.truncf %38 : vector<32x256xf32> to vector<32x256xbf16>
    %cst_16 = arith.constant dense<0.000000e+00> : vector<65x256xf32>
    %41 = tpu.matmul %39, %40, %cst_16 {dimension_numbers = #tpu.dot_dimension_numbers<[1], [0], [0], [1], [0, 0, 1, 1], [], []>} : vector<65x32xbf16>, vector<32x256xbf16>, vector<65x256xf32> -> vector<65x256xf32>
    %42 = vector.broadcast %5 : vector<65x1xf32> to vector<65x256xf32>
    %43 = arith.addf %41, %42 : vector<65x256xf32>
    %44 = vector.extract_strided_slice %43 {offsets = [0, 0], sizes = [32, 256], strides = [1, 1]} : vector<65x256xf32> to vector<32x256xf32>
    %45 = vector.extract_strided_slice %43 {offsets = [32, 0], sizes = [32, 256], strides = [1, 1]} : vector<65x256xf32> to vector<32x256xf32>
    %46 = vector.extract_strided_slice %43 {offsets = [64, 0], sizes = [1, 256], strides = [1, 1]} : vector<65x256xf32> to vector<1x256xf32>
    %cst_17 = arith.constant dense<0xFF800000> : vector<1xf32>
    %47 = vector.multi_reduction <maximumf>, %46, %cst_17 [1] : vector<1x256xf32> to vector<1xf32>
    %48 = vector.shape_cast %47 : vector<1xf32> to vector<1x1xf32>
    %49 = vector.broadcast %48 : vector<1x1xf32> to vector<1x256xf32>
    %50 = arith.subf %46, %49 : vector<1x256xf32>
    %51 = math.exp %50 : vector<1x256xf32>
    %52 = arith.truncf %51 : vector<1x256xf32> to vector<1x256xbf16>
    %cst_18 = arith.constant dense<0.000000e+00> : vector<1x16xf32>
    %53 = tpu.matmul %52, %11, %cst_18 {dimension_numbers = #tpu.dot_dimension_numbers<[1], [0], [0], [1], [0, 0, 1, 1], [], []>} : vector<1x256xbf16>, vector<256x16xbf16>, vector<1x16xf32> -> vector<1x16xf32>
    %54 = vector.broadcast %51 : vector<1x256xf32> to vector<32x256xf32>
    %55 = arith.mulf %44, %54 : vector<32x256xf32>
    %56 = arith.truncf %55 : vector<32x256xf32> to vector<32x256xbf16>
    %cst_19 = arith.constant dense<0.000000e+00> : vector<32x16xf32>
    %57 = tpu.matmul %56, %11, %cst_19 {dimension_numbers = #tpu.dot_dimension_numbers<[1], [0], [0], [1], [0, 0, 1, 1], [], []>} : vector<32x256xbf16>, vector<256x16xbf16>, vector<32x16xf32> -> vector<32x16xf32>
    %58 = vector.broadcast %53 : vector<1x16xf32> to vector<32x16xf32>
    %59 = arith.divf %57, %58 : vector<32x16xf32>
    %60 = arith.truncf %59 : vector<32x16xf32> to vector<32x16xbf16>
    %cst_20 = arith.constant dense<0.000000e+00> : vector<32x256xf32>
    %61 = tpu.matmul %60, %12, %cst_20 {dimension_numbers = #tpu.dot_dimension_numbers<[1], [0], [0], [1], [0, 0, 1, 1], [], []>} : vector<32x16xbf16>, vector<16x256xbf16>, vector<32x256xf32> -> vector<32x256xf32>
    %cst_21 = arith.constant 0.000000e+00 : f32
    %62 = vector.broadcast %cst_21 : f32 to vector<32x256xf32>
    %63 = arith.maximumf %45, %62 : vector<32x256xf32>
    %64 = arith.mulf %63, %61 : vector<32x256xf32>
    %c0_22 = arith.constant 0 : index
    %c0_23 = arith.constant 0 : index
    %65 = vector.load %arg3[%c0_22, %c0_23] : memref<32x32xbf16, #tpu.memory_space<vmem>>, vector<32x32xbf16>
    %66 = arith.truncf %64 : vector<32x256xf32> to vector<32x256xbf16>
    %cst_24 = arith.constant dense<0.000000e+00> : vector<32x256xf32>
    %67 = tpu.matmul %65, %66, %cst_24 {dimension_numbers = #tpu.dot_dimension_numbers<[1], [0], [0], [1], [0, 0, 1, 1], [], []>} : vector<32x32xbf16>, vector<32x256xbf16>, vector<32x256xf32> -> vector<32x256xf32>
    %68 = vector.broadcast %6 : vector<32x1xf32> to vector<32x256xf32>
    %69 = arith.addf %67, %68 : vector<32x256xf32>
    %70 = arith.addf %1, %69 : vector<32x256xf32>
    %cst_25 = arith.constant dense<0.000000e+00> : vector<32xf32>
    %71 = vector.multi_reduction <add>, %70, %cst_25 [1] : vector<32x256xf32> to vector<32xf32>
    %72 = vector.shape_cast %71 : vector<32xf32> to vector<32x1xf32>
    %cst_26 = arith.constant dense<0.000000e+00> : vector<1xf32>
    %73 = vector.multi_reduction <add>, %72, %cst_26 [0] : vector<32x1xf32> to vector<1xf32>
    %74 = vector.shape_cast %73 : vector<1xf32> to vector<1x1xf32>
    %75 = arith.mulf %70, %70 : vector<32x256xf32>
    %cst_27 = arith.constant dense<0.000000e+00> : vector<32xf32>
    %76 = vector.multi_reduction <add>, %75, %cst_27 [1] : vector<32x256xf32> to vector<32xf32>
    %77 = vector.shape_cast %76 : vector<32xf32> to vector<32x1xf32>
    %cst_28 = arith.constant dense<0.000000e+00> : vector<1xf32>
    %78 = vector.multi_reduction <add>, %77, %cst_28 [0] : vector<32x1xf32> to vector<1xf32>
    %79 = vector.shape_cast %78 : vector<1xf32> to vector<1x1xf32>
    %cst_29 = arith.constant 1.22070313E-4 : f32
    %80 = vector.broadcast %cst_29 : f32 to vector<1x1xf32>
    %81 = arith.mulf %74, %80 : vector<1x1xf32>
    %cst_30 = arith.constant 1.22070313E-4 : f32
    %82 = vector.broadcast %cst_30 : f32 to vector<1x1xf32>
    %83 = arith.mulf %79, %82 : vector<1x1xf32>
    %84 = arith.mulf %81, %81 : vector<1x1xf32>
    %85 = arith.subf %83, %84 : vector<1x1xf32>
    %cst_31 = arith.constant 9.99999974E-6 : f32
    %86 = vector.broadcast %cst_31 : f32 to vector<1x1xf32>
    %87 = arith.addf %85, %86 : vector<1x1xf32>
    %88 = math.rsqrt %87 : vector<1x1xf32>
    %89 = vector.broadcast %88 : vector<1x1xf32> to vector<32x1xf32>
    %90 = arith.mulf %89, %7 : vector<32x1xf32>
    %91 = vector.broadcast %81 : vector<1x1xf32> to vector<32x256xf32>
    %92 = arith.subf %70, %91 : vector<32x256xf32>
    %93 = vector.broadcast %90 : vector<32x1xf32> to vector<32x256xf32>
    %94 = arith.mulf %92, %93 : vector<32x256xf32>
    %95 = vector.broadcast %8 : vector<32x1xf32> to vector<32x256xf32>
    %96 = arith.addf %94, %95 : vector<32x256xf32>
    %c0_32 = arith.constant 0 : index
    %c0_33 = arith.constant 0 : index
    %97 = vector.load %arg4[%c0_32, %c0_33] : memref<64x32xbf16, #tpu.memory_space<vmem>>, vector<64x32xbf16>
    %98 = arith.truncf %96 : vector<32x256xf32> to vector<32x256xbf16>
    %cst_34 = arith.constant dense<0.000000e+00> : vector<64x256xf32>
    %99 = tpu.matmul %97, %98, %cst_34 {dimension_numbers = #tpu.dot_dimension_numbers<[1], [0], [0], [1], [0, 0, 1, 1], [], []>} : vector<64x32xbf16>, vector<32x256xbf16>, vector<64x256xf32> -> vector<64x256xf32>
    %100 = vector.broadcast %9 : vector<64x1xf32> to vector<64x256xf32>
    %101 = arith.addf %99, %100 : vector<64x256xf32>
    %cst_35 = arith.constant 5.000000e-01 : f32
    %102 = vector.broadcast %cst_35 : f32 to vector<64x256xf32>
    %103 = arith.mulf %102, %101 : vector<64x256xf32>
    %cst_36 = arith.constant 5.000000e-01 : f32
    %104 = vector.broadcast %cst_36 : f32 to vector<64x256xf32>
    %105 = arith.mulf %104, %101 : vector<64x256xf32>
    %106 = math.tanh %105 : vector<64x256xf32>
    %cst_37 = arith.constant 1.000000e+00 : f32
    %107 = vector.broadcast %cst_37 : f32 to vector<64x256xf32>
    %108 = arith.addf %107, %106 : vector<64x256xf32>
    %109 = arith.mulf %103, %108 : vector<64x256xf32>
    %c0_38 = arith.constant 0 : index
    %c0_39 = arith.constant 0 : index
    %110 = vector.load %arg5[%c0_38, %c0_39] : memref<32x64xbf16, #tpu.memory_space<vmem>>, vector<32x64xbf16>
    %111 = arith.truncf %109 : vector<64x256xf32> to vector<64x256xbf16>
    %cst_40 = arith.constant dense<0.000000e+00> : vector<32x256xf32>
    %112 = tpu.matmul %110, %111, %cst_40 {dimension_numbers = #tpu.dot_dimension_numbers<[1], [0], [0], [1], [0, 0, 1, 1], [], []>} : vector<32x64xbf16>, vector<64x256xbf16>, vector<32x256xf32> -> vector<32x256xf32>
    %113 = vector.broadcast %10 : vector<32x1xf32> to vector<32x256xf32>
    %114 = arith.addf %112, %113 : vector<32x256xf32>
    %115 = arith.addf %70, %114 : vector<32x256xf32>
    %c0_41 = arith.constant 0 : index
    %c0_42 = arith.constant 0 : index
    %c0_43 = arith.constant 0 : index
    %116 = vector.load %arg9[%c0_41, %c0_42, %c0_43] : memref<1x32x256xf32, #tpu.memory_space<vmem>>, vector<1x32x256xf32>
    %117 = vector.shape_cast %116 : vector<1x32x256xf32> to vector<32x256xf32>
    %118 = vector.shape_cast %115 : vector<32x256xf32> to vector<1x32x256xf32>
    tpu.vector_store %arg9[%c0_41, %c0_42, %c0_43], %118 {strides = array<i32>} : memref<1x32x256xf32, #tpu.memory_space<vmem>>, vector<1x32x256xf32>,
    return
  }
  func.func @transform_0(%arg0: i32) -> (i32, i32, i32) {
    %c0_i32 = arith.constant 0 : i32
    %c0_i32_0 = arith.constant 0 : i32
    %c0_i32_1 = arith.constant 0 : i32
    return %arg0, %c0_i32, %c0_i32_0 : i32, i32, i32
  }
  func.func @transform_1(%arg0: i32) -> (i32, i32) {
    %c0_i32 = arith.constant 0 : i32
    %c0_i32_0 = arith.constant 0 : i32
    %c0_i32_1 = arith.constant 0 : i32
    return %c0_i32, %c0_i32_0 : i32, i32
  }
  func.func @transform_2(%arg0: i32) -> (i32, i32) {
    %c0_i32 = arith.constant 0 : i32
    %c0_i32_0 = arith.constant 0 : i32
    %c0_i32_1 = arith.constant 0 : i32
    return %c0_i32, %c0_i32_0 : i32, i32
  }
  func.func @transform_3(%arg0: i32) -> (i32, i32) {
    %c0_i32 = arith.constant 0 : i32
    %c0_i32_0 = arith.constant 0 : i32
    %c0_i32_1 = arith.constant 0 : i32
    return %c0_i32, %c0_i32_0 : i32, i32
  }
  func.func @transform_4(%arg0: i32) -> (i32, i32) {
    %c0_i32 = arith.constant 0 : i32
    %c0_i32_0 = arith.constant 0 : i32
    %c0_i32_1 = arith.constant 0 : i32
    return %c0_i32, %c0_i32_0 : i32, i32
  }
  func.func @transform_5(%arg0: i32) -> (i32, i32) {
    %c0_i32 = arith.constant 0 : i32
    %c0_i32_0 = arith.constant 0 : i32
    %c0_i32_1 = arith.constant 0 : i32
    return %c0_i32, %c0_i32_0 : i32, i32
  }
  func.func @transform_6(%arg0: i32) -> (i32, i32) {
    %c0_i32 = arith.constant 0 : i32
    %c0_i32_0 = arith.constant 0 : i32
    %c0_i32_1 = arith.constant 0 : i32
    return %c0_i32, %c0_i32_0 : i32, i32
  }
  func.func @transform_7(%arg0: i32) -> (i32, i32) {
    %c0_i32 = arith.constant 0 : i32
    %c0_i32_0 = arith.constant 0 : i32
    %c0_i32_1 = arith.constant 0 : i32
    return %c0_i32, %c0_i32_0 : i32, i32
  }
  func.func @transform_8(%arg0: i32) -> (i32, i32, i32) {
    %c0_i32 = arith.constant 0 : i32
    %c0_i32_0 = arith.constant 0 : i32
    %c0_i32_1 = arith.constant 0 : i32
    return %arg0, %c0_i32, %c0_i32_0 : i32, i32, i32
  }
}

</mosaic_0001>

<llo_original>
// kernel: linear_attn_ffn.1
$region0: #{linear_attn_ffn.1}
  #allocation0 [shape = 'u32[]', space=smem, size = 0x4, offset = 0x4, fixed_abs, tag = 'smem constant byte address 0x4 - core index']
  #allocation1 [shape = 'u32[72,128]{1,0:T(1,128)}', space=vmem, size = 0x9000, scoped, tag = 'internal scratch']
  %s0 = inlined_call_operand.vmem [shape: f32[2,32,256], index: 0, kind: input, shape index: {}]
  %s1 = inlined_call_operand.vmem [shape: bf16[65,32], index: 1, kind: input, shape index: {}]
  %s2 = inlined_call_operand.vmem [shape: bf16[32,32], index: 2, kind: input, shape index: {}]
  %s3 = inlined_call_operand.vmem [shape: bf16[64,32], index: 3, kind: input, shape index: {}]
  %s4 = inlined_call_operand.vmem [shape: bf16[32,64], index: 4, kind: input, shape index: {}]
  %s5 = inlined_call_operand.vmem [shape: bf16[256,16], index: 5, kind: input, shape index: {}]
  %s6 = inlined_call_operand.vmem [shape: bf16[16,256], index: 6, kind: input, shape index: {}]
  %s7 = inlined_call_operand.vmem [shape: f32[65,8], index: 7, kind: input, shape index: {}]
  %s8 = inlined_call_operand.vmem [shape: f32[2,32,256], index: 8, kind: output, shape index: {}]
  %s9 = sld [smem:[#allocation0]]
  $region65: #{linear_attn_ffn.1} parent=0
    _
  %s11 = ssub.s32 1, %s9
  %s12 = scalar_select 0, %s11, %s9
  loop: start=0, step=1, limit=4
  $region2: #{linear_attn_ffn.1} parent=0 // loop_pre_header
    _
  $region3: #{linear_attn_ffn.1} parent=0 // loop_header
    %s14 = sphi 0, %s18
    %p15 = scmp.ge.s32.totalorder %s14, 4
    %s24 = sphi 0, %s26
    %s27 = sphi 0, %s24
    %s28 = sphi 0, %s27
    %s44 = sphi 0, %s28
    %s48 = sphi 0, %s48
    %s50 = sphi 0, %s48
    %s51 = sphi 0, %s50
    %s65 = sphi 0, %s51
    %s69 = sphi 0, %s69
    %s71 = sphi 0, %s69
    %s72 = sphi 0, %s71
    %s86 = sphi 0, %s72
    %s90 = sphi 0, %s90
    %s92 = sphi 0, %s90
    %s93 = sphi 0, %s92
    %s107 = sphi 0, %s93
    %s111 = sphi 0, %s111
    %s113 = sphi 0, %s111
    %s114 = sphi 0, %s113
    %s128 = sphi 0, %s114
    %s132 = sphi 0, %s132
    %s134 = sphi 0, %s132
    %s135 = sphi 0, %s134
    %s149 = sphi 0, %s135
    %s153 = sphi 0, %s153
    %s155 = sphi 0, %s153
    %s156 = sphi 0, %s155
    %s170 = sphi 0, %s156
    %s174 = sphi 0, %s174
    %s176 = sphi 0, %s174
    %s177 = sphi 0, %s176
    %s191 = sphi 0, %s177
    %s197 = sphi 0, %s199
    %s200 = sphi 0, %s197
    %s201 = sphi 0, %s200
    %s217 = sphi 0, %s201
  $region4: #{linear_attn_ffn.1} parent=0 // loop_header_branch
    %17 = sbr.rel (%p15) target = $region8
  $region5: #{linear_attn_ffn.1} parent=0 // loop_body
    %s19 = ssub.s32 %s14, 1
    %s20 = ssub.s32 %s14, 2
    %s21 = sadd.s32 %s14, 1
    %s22 = ssub.s32 %s14, %s21
    %p23 = scmp.eq.s32.totalorder %s22, 0
    %s25 = sadd.s32 %s24, 1
    %s26 = scalar_select %p23, %s24, %s25
    %p29 = pneg %p23
    %p30 = scmp.eq.s32.totalorder %s14, 1
    %p31 = por %p29, %p30
    %p32 = scmp.ne.s32.totalorder %s24, %s27
    %p33 = scmp.eq.s32.totalorder %s14, 0
    %p34 = por %p32, %p33
    %p35 = scmp.ne.s32.totalorder %s24, %s27
    %p36 = scmp.eq.s32.totalorder %s19, 1
    %p37 = por %p35, %p36
    %p38 = scmp.ne.s32.totalorder %s27, %s28
    %p39 = scmp.eq.s32.totalorder %s19, 0
    %p40 = por %p38, %p39
    %p41 = scmp.ne.s32.totalorder %s27, %s28
    %p42 = scmp.eq.s32.totalorder %s20, 1
    %p43 = por %p41, %p42
    %p45 = scmp.ne.s32.totalorder %s28, %s44
    %p46 = scmp.eq.s32.totalorder %s20, 0
    %p47 = por %p45, %p46
    %s49 = sadd.s32 %s48, 1
    %p52 = scmp.eq.s32.totalorder %s14, 1
    %p53 = scmp.ne.s32.totalorder %s48, %s50
    %p54 = scmp.eq.s32.totalorder %s14, 0
    %p55 = por %p53, %p54
    %p56 = scmp.ne.s32.totalorder %s48, %s50
    %p57 = scmp.eq.s32.totalorder %s19, 1
    %p58 = por %p56, %p57
    %p59 = scmp.ne.s32.totalorder %s50, %s51
    %p60 = scmp.eq.s32.totalorder %s19, 0
    %p61 = por %p59, %p60
    %p62 = scmp.ne.s32.totalorder %s50, %s51
    %p63 = scmp.eq.s32.totalorder %s20, 1
    %p64 = por %p62, %p63
    %p66 = scmp.ne.s32.totalorder %s51, %s65
    %p67 = scmp.eq.s32.totalorder %s20, 0
    %p68 = por %p66, %p67
    %s70 = sadd.s32 %s69, 1
    %p73 = scmp.eq.s32.totalorder %s14, 1
    %p74 = scmp.ne.s32.totalorder %s69, %s71
    %p75 = scmp.eq.s32.totalorder %s14, 0
    %p76 = por %p74, %p75
    %p77 = scmp.ne.s32.totalorder %s69, %s71
    %p78 = scmp.eq.s32.totalorder %s19, 1
    %p79 = por %p77, %p78
    %p80 = scmp.ne.s32.totalorder %s71, %s72
    %p81 = scmp.eq.s32.totalorder %s19, 0
    %p82 = por %p80, %p81
    %p83 = scmp.ne.s32.totalorder %s71, %s72
    %p84 = scmp.eq.s32.totalorder %s20, 1
    %p85 = por %p83, %p84
    %p87 = scmp.ne.s32.totalorder %s72, %s86
    %p88 = scmp.eq.s32.totalorder %s20, 0
    %p89 = por %p87, %p88
    %s91 = sadd.s32 %s90, 1
    %p94 = scmp.eq.s32.totalorder %s14, 1
    %p95 = scmp.ne.s32.totalorder %s90, %s92
    %p96 = scmp.eq.s32.totalorder %s14, 0
    %p97 = por %p95, %p96
    %p98 = scmp.ne.s32.totalorder %s90, %s92
    %p99 = scmp.eq.s32.totalorder %s19, 1
    %p100 = por %p98, %p99
    %p101 = scmp.ne.s32.totalorder %s92, %s93
    %p102 = scmp.eq.s32.totalorder %s19, 0
    %p103 = por %p101, %p102
    %p104 = scmp.ne.s32.totalorder %s92, %s93
    %p105 = scmp.eq.s32.totalorder %s20, 1
    %p106 = por %p104, %p105
    %p108 = scmp.ne.s32.totalorder %s93, %s107
    %p109 = scmp.eq.s32.totalorder %s20, 0
    %p110 = por %p108, %p109
    %s112 = sadd.s32 %s111, 1
    %p115 = scmp.eq.s32.totalorder %s14, 1
    %p116 = scmp.ne.s32.totalorder %s111, %s113
    %p117 = scmp.eq.s32.totalorder %s14, 0
    %p118 = por %p116, %p117
    %p119 = scmp.ne.s32.totalorder %s111, %s113
    %p120 = scmp.eq.s32.totalorder %s19, 1
    %p121 = por %p119, %p120
    %p122 = scmp.ne.s32.totalorder %s113, %s114
    %p123 = scmp.eq.s32.totalorder %s19, 0
    %p124 = por %p122, %p123
    %p125 = scmp.ne.s32.totalorder %s113, %s114
    %p126 = scmp.eq.s32.totalorder %s20, 1
    %p127 = por %p125, %p126
    %p129 = scmp.ne.s32.totalorder %s114, %s128
    %p130 = scmp.eq.s32.totalorder %s20, 0
    %p131 = por %p129, %p130
    %s133 = sadd.s32 %s132, 1
    %p136 = scmp.eq.s32.totalorder %s14, 1
    %p137 = scmp.ne.s32.totalorder %s132, %s134
    %p138 = scmp.eq.s32.totalorder %s14, 0
    %p139 = por %p137, %p138
    %p140 = scmp.ne.s32.totalorder %s132, %s134
    %p141 = scmp.eq.s32.totalorder %s19, 1
    %p142 = por %p140, %p141
    %p143 = scmp.ne.s32.totalorder %s134, %s135
    %p144 = scmp.eq.s32.totalorder %s19, 0
    %p145 = por %p143, %p144
    %p146 = scmp.ne.s32.totalorder %s134, %s135
    %p147 = scmp.eq.s32.totalorder %s20, 1
    %p148 = por %p146, %p147
    %p150 = scmp.ne.s32.totalorder %s135, %s149
    %p151 = scmp.eq.s32.totalorder %s20, 0
    %p152 = por %p150, %p151
    %s154 = sadd.s32 %s153, 1
    %p157 = scmp.eq.s32.totalorder %s14, 1
    %p158 = scmp.ne.s32.totalorder %s153, %s155
    %p159 = scmp.eq.s32.totalorder %s14, 0
    %p160 = por %p158, %p159
    %p161 = scmp.ne.s32.totalorder %s153, %s155
    %p162 = scmp.eq.s32.totalorder %s19, 1
    %p163 = por %p161, %p162
    %p164 = scmp.ne.s32.totalorder %s155, %s156
    %p165 = scmp.eq.s32.totalorder %s19, 0
    %p166 = por %p164, %p165
    %p167 = scmp.ne.s32.totalorder %s155, %s156
    %p168 = scmp.eq.s32.totalorder %s20, 1
    %p169 = por %p167, %p168
    %p171 = scmp.ne.s32.totalorder %s156, %s170
    %p172 = scmp.eq.s32.totalorder %s20, 0
    %p173 = por %p171, %p172
    %s175 = sadd.s32 %s174, 1
    %p178 = scmp.eq.s32.totalorder %s14, 1
    %p179 = scmp.ne.s32.totalorder %s174, %s176
    %p180 = scmp.eq.s32.totalorder %s14, 0
    %p181 = por %p179, %p180
    %p182 = scmp.ne.s32.totalorder %s174, %s176
    %p183 = scmp.eq.s32.totalorder %s19, 1
    %p184 = por %p182, %p183
    %p185 = scmp.ne.s32.totalorder %s176, %s177
    %p186 = scmp.eq.s32.totalorder %s19, 0
    %p187 = por %p185, %p186
    %p188 = scmp.ne.s32.totalorder %s176, %s177
    %p189 = scmp.eq.s32.totalorder %s20, 1
    %p190 = por %p188, %p189
    %p192 = scmp.ne.s32.totalorder %s177, %s191
    %p193 = scmp.eq.s32.totalorder %s20, 0
    %p194 = por %p192, %p193
    %s195 = ssub.s32 %s14, %s21
    %p196 = scmp.eq.s32.totalorder %s195, 0
    %s198 = sadd.s32 %s197, 1
    %s199 = scalar_select %p196, %s197, %s198
    %p202 = pneg %p196
    %p203 = scmp.eq.s32.totalorder %s14, 1
    %p204 = por %p202, %p203
    %p205 = scmp.ne.s32.totalorder %s197, %s200
    %p206 = scmp.eq.s32.totalorder %s14, 0
    %p207 = por %p205, %p206
    %p208 = scmp.ne.s32.totalorder %s197, %s200
    %p209 = scmp.eq.s32.totalorder %s19, 1
    %p210 = por %p208, %p209
    %p211 = scmp.ne.s32.totalorder %s200, %s201
    %p212 = scmp.eq.s32.totalorder %s19, 0
    %p213 = por %p211, %p212
    %p214 = scmp.ne.s32.totalorder %s200, %s201
    %p215 = scmp.eq.s32.totalorder %s20, 1
    %p216 = por %p214, %p215
    %p218 = scmp.ne.s32.totalorder %s201, %s217
    %p219 = scmp.eq.s32.totalorder %s20, 0
    %p220 = por %p218, %p219
    %p221 = scmp.le.s32.totalorder 1, %s14
    %p222 = scmp.lt.s32.totalorder %s14, 3
    %p223 = pnand %p221, %p222
    %p224 = pneg %p223
    // Predicated region
    $region9: #{linear_attn_ffn.1} parent=5 // pred_check
      _
    $region10: #{linear_attn_ffn.1} parent=5 // pred_check_branch
      %226 = sbr.rel (%p223) target = $region12
    $region11: #{linear_attn_ffn.1} parent=5 // pred_region
      %s227 = ssub.s32 %s14, 1
      // Predicated region
      $region13: #{linear_attn_ffn.1} parent=11 // pred_check
        %p228 = pneg %p61
      $region14: #{linear_attn_ffn.1} parent=11 // pred_check_branch
        %230 = sbr.rel (%p228) target = $region16
      $region15: #{linear_attn_ffn.1} parent=11 // pred_region
        _
      $region16: #{linear_attn_ffn.1} parent=11 // pred_fallthru
        _
      // Predicated region
      $region17: #{linear_attn_ffn.1} parent=11 // pred_check
        %p231 = pneg %p82
      $region18: #{linear_attn_ffn.1} parent=11 // pred_check_branch
        %233 = sbr.rel (%p231) target = $region20
      $region19: #{linear_attn_ffn.1} parent=11 // pred_region
        _
      $region20: #{linear_attn_ffn.1} parent=11 // pred_fallthru
        _
      // Predicated region
      $region21: #{linear_attn_ffn.1} parent=11 // pred_check
        %p234 = pneg %p103
      $region22: #{linear_attn_ffn.1} parent=11 // pred_check_branch
        %236 = sbr.rel (%p234) target = $region24
      $region23: #{linear_attn_ffn.1} parent=11 // pred_region
        _
      $region24: #{linear_attn_ffn.1} parent=11 // pred_fallthru
        _
      // Predicated region
      $region25: #{linear_attn_ffn.1} parent=11 // pred_check
        %p237 = pneg %p124
      $region26: #{linear_attn_ffn.1} parent=11 // pred_check_branch
        %239 = sbr.rel (%p237) target = $region28
      $region27: #{linear_attn_ffn.1} parent=11 // pred_region
        _
      $region28: #{linear_attn_ffn.1} parent=11 // pred_fallthru
        _
      // Predicated region
      $region29: #{linear_attn_ffn.1} parent=11 // pred_check
        %p240 = pneg %p145
      $region30: #{linear_attn_ffn.1} parent=11 // pred_check_branch
        %242 = sbr.rel (%p240) target = $region32
      $region31: #{linear_attn_ffn.1} parent=11 // pred_region
        _
      $region32: #{linear_attn_ffn.1} parent=11 // pred_fallthru
        _
      // Predicated region
      $region33: #{linear_attn_ffn.1} parent=11 // pred_check
        %p243 = pneg %p166
      $region34: #{linear_attn_ffn.1} parent=11 // pred_check_branch
        %245 = sbr.rel (%p243) target = $region36
      $region35: #{linear_attn_ffn.1} parent=11 // pred_region
        _
      $region36: #{linear_attn_ffn.1} parent=11 // pred_fallthru
        _
      // Predicated region
      $region37: #{linear_attn_ffn.1} parent=11 // pred_check
        %p246 = pneg %p187
      $region38: #{linear_attn_ffn.1} parent=11 // pred_check_branch
        %248 = sbr.rel (%p246) target = $region40
      $region39: #{linear_attn_ffn.1} parent=11 // pred_region
        _
      $region40: #{linear_attn_ffn.1} parent=11 // pred_fallthru
        _
    $region12: #{linear_attn_ffn.1} parent=5 // pred_fallthru
      _
    %p249 = scmp.lt.s32.totalorder %s14, 2
    // Predicated region
    $region41: #{linear_attn_ffn.1} parent=5 // pred_check
      %p250 = pneg %p249
    $region42: #{linear_attn_ffn.1} parent=5 // pred_check_branch
      %252 = sbr.rel (%p250) target = $region44
    $region43: #{linear_attn_ffn.1} parent=5 // pred_region
      // Predicated region
      $region45: #{linear_attn_ffn.1} parent=43 // pred_check
        %p253 = pneg %p34
      $region46: #{linear_attn_ffn.1} parent=43 // pred_check_branch
        %255 = sbr.rel (%p253) target = $region48
      $region47: #{linear_attn_ffn.1} parent=43 // pred_region
        %p256 = scmp.lt.s32.totalorder %s14, 1
        %s257 = scalar_select %p256, %s14, 1
        %s258 = smul.addr %s257, 8
        %s259 = smul.addr %s258, 8
        %s260 = scalar_lea.vmem %s0, %s259
      $region48: #{linear_attn_ffn.1} parent=43 // pred_fallthru
        _
    $region44: #{linear_attn_ffn.1} parent=5 // pred_fallthru
      _
    %p261 = scmp.le.s32.totalorder 1, %s14
    %p262 = scmp.lt.s32.totalorder %s14, 3
    %p263 = pnand %p261, %p262
    %p264 = pneg %p263
    // Predicated region
    $region49: #{linear_attn_ffn.1} parent=5 // pred_check
      _
    $region50: #{linear_attn_ffn.1} parent=5 // pred_check_branch
      %266 = sbr.rel (%p263) target = $region52
    $region51: #{linear_attn_ffn.1} parent=5 // pred_region
      %s267 = ssub.s32 %s14, 1
      %p268 = scmp.lt.s32.totalorder %s19, 1
      %s269 = scalar_select %p268, %s19, 1
      %s270 = smul.addr %s269, 8
      %s271 = smul.addr %s270, 8
      %s272 = scalar_lea.vmem %s0, %s271
      %p273 = pneg %p40
      %p274 = pneg %p37
      %p275 = pneg %p61
      %p276 = pneg %p58
      %p277 = pneg %p82
      %p278 = pneg %p79
      %p279 = pneg %p103
      %p280 = pneg %p100
      %p281 = pneg %p124
      %p282 = pneg %p121
      %p283 = pneg %p145
      %p284 = pneg %p142
      %p285 = pneg %p166
      %p286 = pneg %p163
      %p287 = pneg %p187
      %p288 = pneg %p184
      %p289 = pneg %p213
      %p290 = pneg %p210
      %p291 = scmp.lt.s32.totalorder %s19, 1
      %s292 = scalar_select %p291, %s19, 1
      %s293 = smul.addr %s292, 8
      %s294 = smul.addr %s293, 8
      %s295 = scalar_lea.vmem %s8, %s294
      %p296 = scmp.lt.s32.totalorder %s19, 1
      %s297 = scalar_select %p296, %s19, 1
      %s298 = smul.addr %s297, 8
      %s299 = smul.addr %s298, 8
      %s300 = scalar_lea.vmem %s0, %s299
      %p301 = scmp.lt.s32.totalorder %s19, 1
      %s302 = scalar_select %p301, %s19, 1
      %s303 = smul.addr %s302, 8
      %s304 = smul.addr %s303, 8
      %s305 = scalar_lea.vmem %s8, %s304
      %v307 = vld [vmem:[%s300] sm:$0xff]
      %v308 = vld [vmem:[%s300 + $0x8] sm:$0xff]
      %v309 = vld [vmem:[%s300 + $0x10] sm:$0xff]
      %v310 = vld [vmem:[%s300 + $0x18] sm:$0xff]
      %v311 = vld [vmem:[%s300 + $0x20] sm:$0xff]
      %v312 = vld [vmem:[%s300 + $0x28] sm:$0xff]
      %v313 = vld [vmem:[%s300 + $0x30] sm:$0xff]
      %v314 = vld [vmem:[%s300 + $0x38] sm:$0xff]
      %v315 = vld [vmem:[%s7] sm:$0xff]
      %v316 = vld [vmem:[%s7 + $0x8] sm:$0xff]
      %v317 = vld [vmem:[%s7 + $0x10] sm:$0xff]
      %v318 = vld [vmem:[%s7 + $0x18] sm:$0xff]
      %v319 = vld [vmem:[%s7 + $0x20] sm:$0xff]
      %v320 = vld [vmem:[%s7 + $0x28] sm:$0xff]
      %v321 = vld [vmem:[%s7 + $0x30] sm:$0xff]
      %v322 = vld [vmem:[%s7 + $0x38] sm:$0xff]
      %v323 = vld [vmem:[%s7 + $0x40] sm:$0x1]
      %v324 = vld [vmem:[%s5] sm:$0xf]
      %v325 = vld [vmem:[%s5 + $0x4] sm:$0xf]
      %v326 = vld [vmem:[%s5 + $0x8] sm:$0xf]
      %v327 = vld [vmem:[%s5 + $0xc] sm:$0xf]
      %v328 = vld [vmem:[%s5 + $0x10] sm:$0xf]
      %v329 = vld [vmem:[%s5 + $0x14] sm:$0xf]
      %v330 = vld [vmem:[%s5 + $0x18] sm:$0xf]
      %v331 = vld [vmem:[%s5 + $0x1c] sm:$0xf]
      %v332 = vld [vmem:[%s5 + $0x20] sm:$0xf]
      %v333 = vld [vmem:[%s5 + $0x24] sm:$0xf]
      %v334 = vld [vmem:[%s5 + $0x28] sm:$0xf]
      %v335 = vld [vmem:[%s5 + $0x2c] sm:$0xf]
      %v336 = vld [vmem:[%s5 + $0x30] sm:$0xf]
      %v337 = vld [vmem:[%s5 + $0x34] sm:$0xf]
      %v338 = vld [vmem:[%s5 + $0x38] sm:$0xf]
      %v339 = vld [vmem:[%s5 + $0x3c] sm:$0xf]
      %v340 = vld [vmem:[%s5 + $0x40] sm:$0xf]
      %v341 = vld [vmem:[%s5 + $0x44] sm:$0xf]
      %v342 = vld [vmem:[%s5 + $0x48] sm:$0xf]
      %v343 = vld [vmem:[%s5 + $0x4c] sm:$0xf]
      %v344 = vld [vmem:[%s5 + $0x50] sm:$0xf]
      %v345 = vld [vmem:[%s5 + $0x54] sm:$0xf]
      %v346 = vld [vmem:[%s5 + $0x58] sm:$0xf]
      %v347 = vld [vmem:[%s5 + $0x5c] sm:$0xf]
      %v348 = vld [vmem:[%s5 + $0x60] sm:$0xf]
      %v349 = vld [vmem:[%s5 + $0x64] sm:$0xf]
      %v350 = vld [vmem:[%s5 + $0x68] sm:$0xf]
      %v351 = vld [vmem:[%s5 + $0x6c] sm:$0xf]
      %v352 = vld [vmem:[%s5 + $0x70] sm:$0xf]
      %v353 = vld [vmem:[%s5 + $0x74] sm:$0xf]
      %v354 = vld [vmem:[%s5 + $0x78] sm:$0xf]
      %v355 = vld [vmem:[%s5 + $0x7c] sm:$0xf]
      %v356 = vld [vmem:[%s6] sm:$0xff]
      %v357 = vld [vmem:[%s6 + $0x8] sm:$0xff]
      %v358 = vadd.f32 %v307, %v308
      %359 = vadd.xlane.f32.xlu0 %v358
      %v360 = vpop.xlane.xlu0 %359
      %v361 = vadd.f32 %v309, %v310
      %362 = vadd.xlane.f32.xlu0 %v361
      %v363 = vpop.xlane.xlu0 %362
      %v364 = vadd.f32 %v311, %v312
      %365 = vadd.xlane.f32.xlu0 %v364
      %v366 = vpop.xlane.xlu0 %365
      %v367 = vadd.f32 %v313, %v314
      %368 = vadd.xlane.f32.xlu0 %v367
      %v369 = vpop.xlane.xlu0 %368
      %v370 = vadd.f32 %v360, %v363
      %v371 = vadd.f32 %v370, %v366
      %v372 = vadd.f32 %v371, %v369
      %v373 = vrot.slane %v372, 4
      %v374 = vadd.f32 %v372, %v373
      %v375 = vrot.slane %v374, 2
      %v376 = vadd.f32 %v374, %v375
      %v377 = vrot.slane %v376, 1
      %v378 = vadd.f32 %v376, %v377
      %v379 = vmul.f32 %v307, %v307
      %v380 = vmul.f32 %v308, %v308
      %v381 = vmul.f32 %v309, %v309
      %v382 = vmul.f32 %v310, %v310
      %v383 = vmul.f32 %v311, %v311
      %v384 = vmul.f32 %v312, %v312
      %v385 = vmul.f32 %v313, %v313
      %v386 = vmul.f32 %v314, %v314
      %v387 = vadd.f32 %v379, %v380
      %388 = vadd.xlane.f32.xlu0 %v387
      %v389 = vpop.xlane.xlu0 %388
      %v390 = vadd.f32 %v381, %v382
      %391 = vadd.xlane.f32.xlu0 %v390
      %v392 = vpop.xlane.xlu0 %391
      %v393 = vadd.f32 %v383, %v384
      %394 = vadd.xlane.f32.xlu0 %v393
      %v395 = vpop.xlane.xlu0 %394
      %v396 = vadd.f32 %v385, %v386
      %397 = vadd.xlane.f32.xlu0 %v396
      %v398 = vpop.xlane.xlu0 %397
      %v399 = vadd.f32 %v389, %v392
      %v400 = vadd.f32 %v399, %v395
      %v401 = vadd.f32 %v400, %v398
      %v402 = vrot.slane %v401, 4
      %v403 = vadd.f32 %v401, %v402
      %v404 = vrot.slane %v403, 2
      %v405 = vadd.f32 %v403, %v404
      %v406 = vrot.slane %v405, 1
      %v407 = vadd.f32 %v405, %v406
      %v408 = vmul.f32 %v378, 0.00012207031
      %v409 = vmul.f32 %v407, 0.00012207031
      %v410 = vmul.f32 %v408, %v408
      %v411 = vsub.f32 %v409, %v410
      %v412 = vadd.f32 %v411, 1e-05
      %v413 = vrsqrt.pop %v412
      %v414 = vmul.f32 %v413, %v412
      %v415 = vmul.f32 %v414, %v413
      %v416 = vmul.f32 0.5, %v415
      %v417 = vsub.f32 1.5, %v416
      %v418 = vmul.f32 %v413, %v417
      %vm419 = vweird.f32 %v412
      %vm420 = vweird.f32 %v413
      %vm421 = vmor %vm419, %vm420
      %v422 = vsel %vm421, %v413, %v418
      %v423 = vmul.f32 %v422, %v315
      %v424 = vmul.f32 %v422, %v316
      %v425 = vmul.f32 %v422, %v317
      %v426 = vmul.f32 %v422, %v318
      %v427 = vsub.f32 %v307, %v408
      %v428 = vsub.f32 %v308, %v408
      %v429 = vsub.f32 %v309, %v408
      %v430 = vsub.f32 %v310, %v408
      %v431 = vsub.f32 %v311, %v408
      %v432 = vsub.f32 %v312, %v408
      %v433 = vsub.f32 %v313, %v408
      %v434 = vsub.f32 %v314, %v408
      %436 = vset.pattern.permute.xlu0 0
      %437 = vperm.xlu0 %436, %v423
      %v438 = vpop.permute.xlu0 %437
      %441 = vset.pattern.permute.xlu0 0
      %442 = vperm.xlu0 %441, %v424
      %v443 = vpop.permute.xlu0 %442
      %446 = vset.pattern.permute.xlu0 0
      %447 = vperm.xlu0 %446, %v425
      %v448 = vpop.permute.xlu0 %447
      %451 = vset.pattern.permute.xlu0 0
      %452 = vperm.xlu0 %451, %v426
      %v453 = vpop.permute.xlu0 %452
      %v455 = vmul.f32 %v427, %v438
      %v456 = vmul.f32 %v428, %v438
      %v457 = vmul.f32 %v429, %v443
      %v458 = vmul.f32 %v430, %v443
      %v459 = vmul.f32 %v431, %v448
      %v460 = vmul.f32 %v432, %v448
      %v461 = vmul.f32 %v433, %v453
      %v462 = vmul.f32 %v434, %v453
      %464 = vset.pattern.permute.xlu0 1
      %465 = vperm.xlu0 %464, %v315
      %v466 = vpop.permute.xlu0 %465
      %469 = vset.pattern.permute.xlu0 1
      %470 = vperm.xlu0 %469, %v316
      %v471 = vpop.permute.xlu0 %470
      %474 = vset.pattern.permute.xlu0 1
      %475 = vperm.xlu0 %474, %v317
      %v476 = vpop.permute.xlu0 %475
      %479 = vset.pattern.permute.xlu0 1
      %480 = vperm.xlu0 %479, %v318
      %v481 = vpop.permute.xlu0 %480
      %v483 = vadd.f32 %v455, %v466
      %v484 = vadd.f32 %v456, %v466
      %v485 = vadd.f32 %v457, %v471
      %v486 = vadd.f32 %v458, %v471
      %v487 = vadd.f32 %v459, %v476
      %v488 = vadd.f32 %v460, %v476
      %v489 = vadd.f32 %v461, %v481
      %v490 = vadd.f32 %v462, %v481
      %v491 = vld [vmem:[%s1] sm:$0xf]
      %v492 = vld [vmem:[%s1 + $0x4] sm:$0xf]
      %v493 = vld [vmem:[%s1 + $0x8] sm:$0xf]
      %v494 = vld [vmem:[%s1 + $0xc] sm:$0xf]
      %v495 = vld [vmem:[%s1 + $0x10] sm:$0xf]
      %v496 = vld [vmem:[%s1 + $0x14] sm:$0xf]
      %v497 = vld [vmem:[%s1 + $0x18] sm:$0xf]
      %v498 = vld [vmem:[%s1 + $0x1c] sm:$0xf]
      %v499 = vld [vmem:[%s1 + $0x20] sm:$0x1]
      %v500 = vpack.c.bf16 %v485, %v483
      %v501 = vpack.c.bf16 %v486, %v484
      %v502 = vpack.c.bf16 %v489, %v487
      %v503 = vpack.c.bf16 %v490, %v488
      %504 = vset.pattern.permute.xlu0 2
      %505 = vperm.xlu0 %504, %v315
      %v506 = vpop.permute.xlu0 %505
      %508 = vset.pattern.permute.xlu0 2
      %509 = vperm.xlu0 %508, %v316
      %v510 = vpop.permute.xlu0 %509
      %512 = vset.pattern.permute.xlu0 2
      %513 = vperm.xlu0 %512, %v317
      %v514 = vpop.permute.xlu0 %513
      %516 = vset.pattern.permute.xlu0 2
      %517 = vperm.xlu0 %516, %v318
      %v518 = vpop.permute.xlu0 %517
      %521 = vset.pattern.permute.xlu0 2
      %522 = vperm.xlu0 %521, %v319
      %v523 = vpop.permute.xlu0 %522
      %526 = vset.pattern.permute.xlu0 2
      %527 = vperm.xlu0 %526, %v320
      %v528 = vpop.permute.xlu0 %527
      %531 = vset.pattern.permute.xlu0 2
      %532 = vperm.xlu0 %531, %v321
      %v533 = vpop.permute.xlu0 %532
      %536 = vset.pattern.permute.xlu0 2
      %537 = vperm.xlu0 %536, %v322
      %v538 = vpop.permute.xlu0 %537
      %541 = vset.pattern.permute.xlu0 2
      %542 = vperm.xlu0 %541, %v323
      %v543 = vpop.permute.xlu0 %542
      %v554 = vunpack.c.l.b16 %v491
      %v555 = vunpack.c.l.b16 %v492
      %v556 = vunpack.c.l.b16 %v493
      %v557 = vunpack.c.l.b16 %v494
      %v558 = vunpack.c.l.b16 %v495
      %v559 = vunpack.c.l.b16 %v496
      %v560 = vunpack.c.l.b16 %v497
      %v561 = vunpack.c.l.b16 %v498
      %v562 = vunpack.c.l.b16 %v499
      %v563 = vpack.c.b16 %v555, %v554
      %v564 = vpack.c.b16 %v557, %v556
      %v565 = vpack.c.b16 %v559, %v558
      %v566 = vpack.c.b16 %v561, %v560
      %v567 = vpack.c.b16 %v562, %v562
      %vm568 = vcmask 261120
      %v570 = vsel %vm568, %v563, 0
      %v573 = vsel %vm568, %v564, 0
      %v576 = vsel %vm568, %v565, 0
      %v579 = vsel %vm568, %v566, 0
      %v582 = vsel %vm568, %v567, 0
      %584 = vmatpush.bf16.msra.mxu0 0
      %585 = vmatpush.bf16.msra.mxu0 0
      %586 = vmatpush.bf16.msra.mxu0 0
      %587 = vmatpush.bf16.msra.mxu0 0
      %588 = vmatpush.bf16.msra.mxu0 0
      %589 = vmatpush.bf16.msra.mxu0 0
      %590 = vmatpush.bf16.msra.mxu0 %v502
      %591 = vmatpush.bf16.msra.mxu0 %v500
      %592 = vmatmul.bf16.gmra.mxu0 %v570
      %v593 = vpop.f32.mrf.mxu0
      %v594 = vadd.f32 %v506, %v593
      %v595 = vpop.f32.mrf.mxu0
      %v596 = vadd.f32 %v510, %v595
      %597 = vmatmul.bf16.gmra.mxu0 %v573
      %v598 = vpop.f32.mrf.mxu0
      %v599 = vadd.f32 %v514, %v598
      %v600 = vpop.f32.mrf.mxu0
      %v601 = vadd.f32 %v518, %v600
      %602 = vmatmul.bf16.gmra.mxu0 %v576
      %v603 = vpop.f32.mrf.mxu0
      %v604 = vadd.f32 %v523, %v603
      %v605 = vpop.f32.mrf.mxu0
      %v606 = vadd.f32 %v528, %v605
      %607 = vmatmul.bf16.gmra.mxu0 %v579
      %v608 = vpop.f32.mrf.mxu0
      %v609 = vadd.f32 %v533, %v608
      %v610 = vpop.f32.mrf.mxu0
      %v611 = vadd.f32 %v538, %v610
      %612 = vmatmul.bf16.gmra.mxu0 %v582
      %v613 = vpop.f32.mrf.mxu0
      %v614 = vadd.f32 %v543, %v613
      %v615 = vpop.f32.mrf.mxu0
      %616 = vdwg.mxu0
      %617 = vmatpush.bf16.msra.mxu0 0
      %618 = vmatpush.bf16.msra.mxu0 0
      %619 = vmatpush.bf16.msra.mxu0 0
      %620 = vmatpush.bf16.msra.mxu0 0
      %621 = vmatpush.bf16.msra.mxu0 0
      %622 = vmatpush.bf16.msra.mxu0 0
      %623 = vmatpush.bf16.msra.mxu0 %v503
      %624 = vmatpush.bf16.msra.mxu0 %v501
      %625 = vmatmul.bf16.gmra.mxu0 %v570
      %v626 = vpop.f32.mrf.mxu0
      %v627 = vadd.f32 %v506, %v626
      %v628 = vpop.f32.mrf.mxu0
      %v629 = vadd.f32 %v510, %v628
      %630 = vmatmul.bf16.gmra.mxu0 %v573
      %v631 = vpop.f32.mrf.mxu0
      %v632 = vadd.f32 %v514, %v631
      %v633 = vpop.f32.mrf.mxu0
      %v634 = vadd.f32 %v518, %v633
      %635 = vmatmul.bf16.gmra.mxu0 %v576
      %v636 = vpop.f32.mrf.mxu0
      %v637 = vadd.f32 %v523, %v636
      %v638 = vpop.f32.mrf.mxu0
      %v639 = vadd.f32 %v528, %v638
      %640 = vmatmul.bf16.gmra.mxu0 %v579
      %v641 = vpop.f32.mrf.mxu0
      %v642 = vadd.f32 %v533, %v641
      %v643 = vpop.f32.mrf.mxu0
      %v644 = vadd.f32 %v538, %v643
      %645 = vmatmul.bf16.gmra.mxu0 %v582
      %v646 = vpop.f32.mrf.mxu0
      %v647 = vadd.f32 %v543, %v646
      %v648 = vpop.f32.mrf.mxu0
      %649 = vdwg.mxu0
      %vm650 = vcmask 1040384
      %v651 = vsel %vm650, %v614, -inf
      %v652 = vsel %vm650, %v647, -inf
      %v653 = vmax.f32 %v651, %v652
      %654 = vmax.xlane.f32.xlu0 %v653
      %v655 = vpop.xlane.xlu0 %654
      %v656 = vsub.f32 %v614, %v655
      %v657 = vsub.f32 %v647, %v655
      %v658 = vmul.f32 %v656, 1.442695
      %v659 = vpow.pop %v658
      %v660 = vmul.f32 %v657, 1.442695
      %v661 = vpow.pop %v660
      %v662 = vpack.c.bf16 %v659, %v659
      %v663 = vpack.c.bf16 %v661, %v661
      %v696 = vunpack.c.l.b16 %v324
      %v697 = vunpack.c.l.b16 %v325
      %v698 = vunpack.c.l.b16 %v326
      %v699 = vunpack.c.l.b16 %v327
      %v700 = vunpack.c.l.b16 %v328
      %v701 = vunpack.c.l.b16 %v329
      %v702 = vunpack.c.l.b16 %v330
      %v703 = vunpack.c.l.b16 %v331
      %v704 = vunpack.c.l.b16 %v332
      %v705 = vunpack.c.l.b16 %v333
      %v706 = vunpack.c.l.b16 %v334
      %v707 = vunpack.c.l.b16 %v335
      %v708 = vunpack.c.l.b16 %v336
      %v709 = vunpack.c.l.b16 %v337
      %v710 = vunpack.c.l.b16 %v338
      %v711 = vunpack.c.l.b16 %v339
      %v712 = vunpack.c.l.b16 %v340
      %v713 = vunpack.c.l.b16 %v341
      %v714 = vunpack.c.l.b16 %v342
      %v715 = vunpack.c.l.b16 %v343
      %v716 = vunpack.c.l.b16 %v344
      %v717 = vunpack.c.l.b16 %v345
      %v718 = vunpack.c.l.b16 %v346
      %v719 = vunpack.c.l.b16 %v347
      %v720 = vunpack.c.l.b16 %v348
      %v721 = vunpack.c.l.b16 %v349
      %v722 = vunpack.c.l.b16 %v350
      %v723 = vunpack.c.l.b16 %v351
      %v724 = vunpack.c.l.b16 %v352
      %v725 = vunpack.c.l.b16 %v353
      %v726 = vunpack.c.l.b16 %v354
      %v727 = vunpack.c.l.b16 %v355
      %v728 = vpack.c.b16 %v697, %v696
      %v729 = vpack.c.b16 %v699, %v698
      %v730 = vpack.c.b16 %v701, %v700
      %v731 = vpack.c.b16 %v703, %v702
      %v732 = vpack.c.b16 %v705, %v704
      %v733 = vpack.c.b16 %v707, %v706
      %v734 = vpack.c.b16 %v709, %v708
      %v735 = vpack.c.b16 %v711, %v710
      %v736 = vpack.c.b16 %v713, %v712
      %v737 = vpack.c.b16 %v715, %v714
      %v738 = vpack.c.b16 %v717, %v716
      %v739 = vpack.c.b16 %v719, %v718
      %v740 = vpack.c.b16 %v721, %v720
      %v741 = vpack.c.b16 %v723, %v722
      %v742 = vpack.c.b16 %v725, %v724
      %v743 = vpack.c.b16 %v727, %v726
      %760 = vmatpush.bf16.msra.mxu0 %v735
      %761 = vmatpush.bf16.msra.mxu0 %v734
      %762 = vmatpush.bf16.msra.mxu0 %v733
      %763 = vmatpush.bf16.msra.mxu0 %v732
      %764 = vmatpush.bf16.msra.mxu0 %v731
      %765 = vmatpush.bf16.msra.mxu0 %v730
      %766 = vmatpush.bf16.msra.mxu0 %v729
      %767 = vmatpush.bf16.msra.mxu0 %v728
      %768 = vmatmul.bf16.gmra.mxu0 %v662
      %v769 = vpop.f32.mrf.mxu0
      %v770 = vadd.f32 0.0, %v769
      %v771 = vpop.f32.mrf.mxu0
      %772 = vdwg.mxu0
      %773 = vmatpush.bf16.msra.mxu0 %v743
      %774 = vmatpush.bf16.msra.mxu0 %v742
      %775 = vmatpush.bf16.msra.mxu0 %v741
      %776 = vmatpush.bf16.msra.mxu0 %v740
      %777 = vmatpush.bf16.msra.mxu0 %v739
      %778 = vmatpush.bf16.msra.mxu0 %v738
      %779 = vmatpush.bf16.msra.mxu0 %v737
      %780 = vmatpush.bf16.msra.mxu0 %v736
      %781 = vmatmul.bf16.gmra.mxu0 %v663
      %v782 = vpop.f32.mrf.mxu0
      %v783 = vadd.f32 %v770, %v782
      %v784 = vpop.f32.mrf.mxu0
      %785 = vdwg.mxu0
      %v786 = vperm.slane %v659, 0
      %v787 = vperm.slane %v661, 0
      %v788 = vmul.f32 %v594, %v786
      %v789 = vmul.f32 %v627, %v787
      %v790 = vmul.f32 %v596, %v786
      %v791 = vmul.f32 %v629, %v787
      %v792 = vmul.f32 %v599, %v786
      %v793 = vmul.f32 %v632, %v787
      %v794 = vmul.f32 %v601, %v786
      %v795 = vmul.f32 %v634, %v787
      %v796 = vpack.c.bf16 %v790, %v788
      %v797 = vpack.c.bf16 %v791, %v789
      %v798 = vpack.c.bf16 %v794, %v792
      %v799 = vpack.c.bf16 %v795, %v793
      %800 = vmatpush.bf16.msra.mxu0 %v735
      %801 = vmatpush.bf16.msra.mxu0 %v734
      %802 = vmatpush.bf16.msra.mxu0 %v733
      %803 = vmatpush.bf16.msra.mxu0 %v732
      %804 = vmatpush.bf16.msra.mxu0 %v731
      %805 = vmatpush.bf16.msra.mxu0 %v730
      %806 = vmatpush.bf16.msra.mxu0 %v729
      %807 = vmatpush.bf16.msra.mxu0 %v728
      %808 = vmatmul.bf16.gmra.mxu0 %v796
      %v809 = vpop.f32.mrf.mxu0
      %v810 = vadd.f32 0.0, %v809
      %v811 = vpop.f32.mrf.mxu0
      %v812 = vadd.f32 0.0, %v811
      %813 = vmatmul.bf16.gmra.mxu0 %v798
      %v814 = vpop.f32.mrf.mxu0
      %v815 = vadd.f32 0.0, %v814
      %v816 = vpop.f32.mrf.mxu0
      %v817 = vadd.f32 0.0, %v816
      %818 = vdwg.mxu0
      %819 = vmatpush.bf16.msra.mxu0 %v743
      %820 = vmatpush.bf16.msra.mxu0 %v742
      %821 = vmatpush.bf16.msra.mxu0 %v741
      %822 = vmatpush.bf16.msra.mxu0 %v740
      %823 = vmatpush.bf16.msra.mxu0 %v739
      %824 = vmatpush.bf16.msra.mxu0 %v738
      %825 = vmatpush.bf16.msra.mxu0 %v737
      %826 = vmatpush.bf16.msra.mxu0 %v736
      %827 = vmatmul.bf16.gmra.mxu0 %v797
      %v828 = vpop.f32.mrf.mxu0
      %v829 = vadd.f32 %v810, %v828
      %v830 = vpop.f32.mrf.mxu0
      %v831 = vadd.f32 %v812, %v830
      %832 = vmatmul.bf16.gmra.mxu0 %v799
      %v833 = vpop.f32.mrf.mxu0
      %v834 = vadd.f32 %v815, %v833
      %v835 = vpop.f32.mrf.mxu0
      %v836 = vadd.f32 %v817, %v835
      %837 = vdwg.mxu0
      %v838 = vperm.slane %v783, 0
      %v839 = vrcp.pop %v838
      %v840 = vmul.f32 %v838, %v839
      %v841 = vsub.f32 1.0, %v840
      %v842 = vmul.f32 %v839, %v841
      %v843 = vadd.f32 %v839, %v842
      %vm844 = vweird.f32 %v838
      %vm845 = vweird.f32 %v839
      %vm846 = vmor %vm844, %vm845
      %v847 = vsel %vm846, %v839, %v843
      %v848 = vand.u32 2147483647, %v838
      %vm849 = vcmp.eq.f32.partialorder %v848, 8.507059e+37
      %v850 = vand.u32 %v838, 2147483648
      %v851 = vor.u32 1.1754944e-38, %v850
      %v852 = vsel %vm849, %v851, %v847
      %v853 = vmul.f32 %v829, %v852
      %v854 = vmul.f32 %v831, %v852
      %v855 = vmul.f32 %v834, %v852
      %v856 = vmul.f32 %v836, %v852
      %v857 = vpack.c.bf16 %v854, %v853
      %v858 = vpack.c.bf16 %v856, %v855
      %v861 = vunpack.c.l.b16 %v356
      %v862 = vunpack.c.h.b16 %v356
      %v863 = vunpack.c.l.b16 %v357
      %v864 = vunpack.c.h.b16 %v357
      %v865 = vpack.c.b16 %v863, %v861
      %v866 = vpack.c.b16 %v864, %v862
      %vm869 = vcmask 130048
      %v871 = vsel %vm869, %v857, 0
      %v874 = vsel %vm869, %v858, 0
      %876 = vmatpush.bf16.msra.mxu0 0
      %877 = vmatpush.bf16.msra.mxu0 0
      %878 = vmatpush.bf16.msra.mxu0 0
      %879 = vmatpush.bf16.msra.mxu0 0
      %880 = vmatpush.bf16.msra.mxu0 0
      %881 = vmatpush.bf16.msra.mxu0 0
      %882 = vmatpush.bf16.msra.mxu0 0
      %883 = vmatpush.bf16.msra.mxu0 %v865
      %884 = vmatmul.bf16.gmra.mxu0 %v871
      %v885 = vpop.f32.mrf.mxu0
      %v886 = vadd.f32 0.0, %v885
      %v887 = vpop.f32.mrf.mxu0
      %v888 = vadd.f32 0.0, %v887
      %889 = vmatmul.bf16.gmra.mxu0 %v874
      %v890 = vpop.f32.mrf.mxu0
      %v891 = vadd.f32 0.0, %v890
      %v892 = vpop.f32.mrf.mxu0
      %v893 = vadd.f32 0.0, %v892
      %894 = vdwg.mxu0
      %895 = vmatpush.bf16.msra.mxu0 0
      %896 = vmatpush.bf16.msra.mxu0 0
      %897 = vmatpush.bf16.msra.mxu0 0
      %898 = vmatpush.bf16.msra.mxu0 0
      %899 = vmatpush.bf16.msra.mxu0 0
      %900 = vmatpush.bf16.msra.mxu0 0
      %901 = vmatpush.bf16.msra.mxu0 0
      %902 = vmatpush.bf16.msra.mxu0 %v866
      %903 = vmatmul.bf16.gmra.mxu0 %v871
      %v904 = vpop.f32.mrf.mxu0
      %v905 = vadd.f32 0.0, %v904
      %v906 = vpop.f32.mrf.mxu0
      %v907 = vadd.f32 0.0, %v906
      %908 = vmatmul.bf16.gmra.mxu0 %v874
      %v909 = vpop.f32.mrf.mxu0
      %v910 = vadd.f32 0.0, %v909
      %v911 = vpop.f32.mrf.mxu0
      %v912 = vadd.f32 0.0, %v911
      %913 = vdwg.mxu0
      %v914 = vmax.f32 %v604, 0.0
      %v915 = vmax.f32 %v637, 0.0
      %v916 = vmax.f32 %v606, 0.0
      %v917 = vmax.f32 %v639, 0.0
      %v918 = vmax.f32 %v609, 0.0
      %v919 = vmax.f32 %v642, 0.0
      %v920 = vmax.f32 %v611, 0.0
      %v921 = vmax.f32 %v644, 0.0
      %v922 = vmul.f32 %v914, %v886
      %v923 = vmul.f32 %v915, %v905
      %v924 = vmul.f32 %v916, %v888
      %v925 = vmul.f32 %v917, %v907
      %v926 = vmul.f32 %v918, %v891
      %v927 = vmul.f32 %v919, %v910
      %v928 = vmul.f32 %v920, %v893
      %v929 = vmul.f32 %v921, %v912
      %v930 = vld [vmem:[%s2] sm:$0xf]
      %v931 = vld [vmem:[%s2 + $0x4] sm:$0xf]
      %v932 = vld [vmem:[%s2 + $0x8] sm:$0xf]
      %v933 = vld [vmem:[%s2 + $0xc] sm:$0xf]
      %v934 = vpack.c.bf16 %v924, %v922
      %v935 = vpack.c.bf16 %v925, %v923
      %v936 = vpack.c.bf16 %v928, %v926
      %v937 = vpack.c.bf16 %v929, %v927
      %938 = vset.pattern.permute.xlu0 3
      %939 = vperm.xlu0 %938, %v315
      %v940 = vpop.permute.xlu0 %939
      %942 = vset.pattern.permute.xlu0 3
      %943 = vperm.xlu0 %942, %v316
      %v944 = vpop.permute.xlu0 %943
      %946 = vset.pattern.permute.xlu0 3
      %947 = vperm.xlu0 %946, %v317
      %v948 = vpop.permute.xlu0 %947
      %950 = vset.pattern.permute.xlu0 3
      %951 = vperm.xlu0 %950, %v318
      %v952 = vpop.permute.xlu0 %951
      %v958 = vunpack.c.l.b16 %v930
      %v959 = vunpack.c.l.b16 %v931
      %v960 = vunpack.c.l.b16 %v932
      %v961 = vunpack.c.l.b16 %v933
      %v962 = vpack.c.b16 %v959, %v958
      %v963 = vpack.c.b16 %v961, %v960
      %v965 = vsel %vm568, %v962, 0
      %v968 = vsel %vm568, %v963, 0
      %970 = vmatpush.bf16.msra.mxu0 0
      %971 = vmatpush.bf16.msra.mxu0 0
      %972 = vmatpush.bf16.msra.mxu0 0
      %973 = vmatpush.bf16.msra.mxu0 0
      %974 = vmatpush.bf16.msra.mxu0 0
      %975 = vmatpush.bf16.msra.mxu0 0
      %976 = vmatpush.bf16.msra.mxu0 %v936
      %977 = vmatpush.bf16.msra.mxu0 %v934
      %978 = vmatmul.bf16.gmra.mxu0 %v965
      %v979 = vpop.f32.mrf.mxu0
      %v980 = vadd.f32 %v940, %v979
      %v981 = vpop.f32.mrf.mxu0
      %v982 = vadd.f32 %v944, %v981
      %983 = vmatmul.bf16.gmra.mxu0 %v968
      %v984 = vpop.f32.mrf.mxu0
      %v985 = vadd.f32 %v948, %v984
      %v986 = vpop.f32.mrf.mxu0
      %v987 = vadd.f32 %v952, %v986
      %988 = vdwg.mxu0
      %989 = vmatpush.bf16.msra.mxu0 0
      %990 = vmatpush.bf16.msra.mxu0 0
      %991 = vmatpush.bf16.msra.mxu0 0
      %992 = vmatpush.bf16.msra.mxu0 0
      %993 = vmatpush.bf16.msra.mxu0 0
      %994 = vmatpush.bf16.msra.mxu0 0
      %995 = vmatpush.bf16.msra.mxu0 %v937
      %996 = vmatpush.bf16.msra.mxu0 %v935
      %997 = vmatmul.bf16.gmra.mxu0 %v965
      %v998 = vpop.f32.mrf.mxu0
      %v999 = vadd.f32 %v940, %v998
      %v1000 = vpop.f32.mrf.mxu0
      %v1001 = vadd.f32 %v944, %v1000
      %1002 = vmatmul.bf16.gmra.mxu0 %v968
      %v1003 = vpop.f32.mrf.mxu0
      %v1004 = vadd.f32 %v948, %v1003
      %v1005 = vpop.f32.mrf.mxu0
      %v1006 = vadd.f32 %v952, %v1005
      %1007 = vdwg.mxu0
      %v1008 = vadd.f32 %v307, %v980
      %v1009 = vadd.f32 %v308, %v999
      %v1010 = vadd.f32 %v309, %v982
      %v1011 = vadd.f32 %v310, %v1001
      %v1012 = vadd.f32 %v311, %v985
      %v1013 = vadd.f32 %v312, %v1004
      %v1014 = vadd.f32 %v313, %v987
      %v1015 = vadd.f32 %v314, %v1006
      %v1016 = vadd.f32 %v1008, %v1009
      %1017 = vadd.xlane.f32.xlu0 %v1016
      %v1018 = vpop.xlane.xlu0 %1017
      %v1019 = vadd.f32 %v1010, %v1011
      %1020 = vadd.xlane.f32.xlu0 %v1019
      %v1021 = vpop.xlane.xlu0 %1020
      %v1022 = vadd.f32 %v1012, %v1013
      %1023 = vadd.xlane.f32.xlu0 %v1022
      %v1024 = vpop.xlane.xlu0 %1023
      %v1025 = vadd.f32 %v1014, %v1015
      %1026 = vadd.xlane.f32.xlu0 %v1025
      %v1027 = vpop.xlane.xlu0 %1026
      %v1028 = vadd.f32 %v1018, %v1021
      %v1029 = vadd.f32 %v1028, %v1024
      %v1030 = vadd.f32 %v1029, %v1027
      %v1031 = vrot.slane %v1030, 4
      %v1032 = vadd.f32 %v1030, %v1031
      %v1033 = vrot.slane %v1032, 2
      %v1034 = vadd.f32 %v1032, %v1033
      %v1035 = vrot.slane %v1034, 1
      %v1036 = vadd.f32 %v1034, %v1035
      %v1037 = vmul.f32 %v1008, %v1008
      %v1038 = vmul.f32 %v1009, %v1009
      %v1039 = vmul.f32 %v1010, %v1010
      %v1040 = vmul.f32 %v1011, %v1011
      %v1041 = vmul.f32 %v1012, %v1012
      %v1042 = vmul.f32 %v1013, %v1013
      %v1043 = vmul.f32 %v1014, %v1014
      %v1044 = vmul.f32 %v1015, %v1015
      %v1045 = vadd.f32 %v1037, %v1038
      %1046 = vadd.xlane.f32.xlu0 %v1045
      %v1047 = vpop.xlane.xlu0 %1046
      %v1048 = vadd.f32 %v1039, %v1040
      %1049 = vadd.xlane.f32.xlu0 %v1048
      %v1050 = vpop.xlane.xlu0 %1049
      %v1051 = vadd.f32 %v1041, %v1042
      %1052 = vadd.xlane.f32.xlu0 %v1051
      %v1053 = vpop.xlane.xlu0 %1052
      %v1054 = vadd.f32 %v1043, %v1044
      %1055 = vadd.xlane.f32.xlu0 %v1054
      %v1056 = vpop.xlane.xlu0 %1055
      %v1057 = vadd.f32 %v1047, %v1050
      %v1058 = vadd.f32 %v1057, %v1053
      %v1059 = vadd.f32 %v1058, %v1056
      %v1060 = vrot.slane %v1059, 4
      %v1061 = vadd.f32 %v1059, %v1060
      %v1062 = vrot.slane %v1061, 2
      %v1063 = vadd.f32 %v1061, %v1062
      %v1064 = vrot.slane %v1063, 1
      %v1065 = vadd.f32 %v1063, %v1064
      %v1066 = vmul.f32 %v1036, 0.00012207031
      %v1067 = vmul.f32 %v1065, 0.00012207031
      %v1068 = vmul.f32 %v1066, %v1066
      %v1069 = vsub.f32 %v1067, %v1068
      %v1070 = vadd.f32 %v1069, 1e-05
      %v1071 = vrsqrt.pop %v1070
      %v1072 = vmul.f32 %v1071, %v1070
      %v1073 = vmul.f32 %v1072, %v1071
      %v1074 = vmul.f32 0.5, %v1073
      %v1075 = vsub.f32 1.5, %v1074
      %v1076 = vmul.f32 %v1071, %v1075
      %vm1077 = vweird.f32 %v1070
      %vm1078 = vweird.f32 %v1071
      %vm1079 = vmor %vm1077, %vm1078
      %v1080 = vsel %vm1079, %v1071, %v1076
      %v1081 = vmul.f32 %v1080, %v315
      %v1082 = vmul.f32 %v1080, %v316
      %v1083 = vmul.f32 %v1080, %v317
      %v1084 = vmul.f32 %v1080, %v318
      %v1085 = vsub.f32 %v1008, %v1066
      %v1086 = vsub.f32 %v1009, %v1066
      %v1087 = vsub.f32 %v1010, %v1066
      %v1088 = vsub.f32 %v1011, %v1066
      %v1089 = vsub.f32 %v1012, %v1066
      %v1090 = vsub.f32 %v1013, %v1066
      %v1091 = vsub.f32 %v1014, %v1066
      %v1092 = vsub.f32 %v1015, %v1066
      %1094 = vset.pattern.permute.xlu0 4
      %1095 = vperm.xlu0 %1094, %v1081
      %v1096 = vpop.permute.xlu0 %1095
      %1099 = vset.pattern.permute.xlu0 4
      %1100 = vperm.xlu0 %1099, %v1082
      %v1101 = vpop.permute.xlu0 %1100
      %1104 = vset.pattern.permute.xlu0 4
      %1105 = vperm.xlu0 %1104, %v1083
      %v1106 = vpop.permute.xlu0 %1105
      %1109 = vset.pattern.permute.xlu0 4
      %1110 = vperm.xlu0 %1109, %v1084
      %v1111 = vpop.permute.xlu0 %1110
      %v1113 = vmul.f32 %v1085, %v1096
      %v1114 = vmul.f32 %v1086, %v1096
      %v1115 = vmul.f32 %v1087, %v1101
      %v1116 = vmul.f32 %v1088, %v1101
      %v1117 = vmul.f32 %v1089, %v1106
      %v1118 = vmul.f32 %v1090, %v1106
      %v1119 = vmul.f32 %v1091, %v1111
      %v1120 = vmul.f32 %v1092, %v1111
      %1121 = vset.pattern.permute.xlu0 5
      %1122 = vperm.xlu0 %1121, %v315
      %v1123 = vpop.permute.xlu0 %1122
      %1125 = vset.pattern.permute.xlu0 5
      %1126 = vperm.xlu0 %1125, %v316
      %v1127 = vpop.permute.xlu0 %1126
      %1129 = vset.pattern.permute.xlu0 5
      %1130 = vperm.xlu0 %1129, %v317
      %v1131 = vpop.permute.xlu0 %1130
      %1133 = vset.pattern.permute.xlu0 5
      %1134 = vperm.xlu0 %1133, %v318
      %v1135 = vpop.permute.xlu0 %1134
      %v1137 = vadd.f32 %v1113, %v1123
      %v1138 = vadd.f32 %v1114, %v1123
      %v1139 = vadd.f32 %v1115, %v1127
      %v1140 = vadd.f32 %v1116, %v1127
      %v1141 = vadd.f32 %v1117, %v1131
      %v1142 = vadd.f32 %v1118, %v1131
      %v1143 = vadd.f32 %v1119, %v1135
      %v1144 = vadd.f32 %v1120, %v1135
      %v1145 = vld [vmem:[%s3] sm:$0xf]
      %v1146 = vld [vmem:[%s3 + $0x4] sm:$0xf]
      %v1147 = vld [vmem:[%s3 + $0x8] sm:$0xf]
      %v1148 = vld [vmem:[%s3 + $0xc] sm:$0xf]
      %v1149 = vld [vmem:[%s3 + $0x10] sm:$0xf]
      %v1150 = vld [vmem:[%s3 + $0x14] sm:$0xf]
      %v1151 = vld [vmem:[%s3 + $0x18] sm:$0xf]
      %v1152 = vld [vmem:[%s3 + $0x1c] sm:$0xf]
      %v1153 = vpack.c.bf16 %v1139, %v1137
      %v1154 = vpack.c.bf16 %v1140, %v1138
      %v1155 = vpack.c.bf16 %v1143, %v1141
      %v1156 = vpack.c.bf16 %v1144, %v1142
      %1157 = vset.pattern.permute.xlu0 6
      %1158 = vperm.xlu0 %1157, %v315
      %v1159 = vpop.permute.xlu0 %1158
      %1161 = vset.pattern.permute.xlu0 6
      %1162 = vperm.xlu0 %1161, %v316
      %v1163 = vpop.permute.xlu0 %1162
      %1165 = vset.pattern.permute.xlu0 6
      %1166 = vperm.xlu0 %1165, %v317
      %v1167 = vpop.permute.xlu0 %1166
      %1169 = vset.pattern.permute.xlu0 6
      %1170 = vperm.xlu0 %1169, %v318
      %v1171 = vpop.permute.xlu0 %1170
      %1173 = vset.pattern.permute.xlu0 6
      %1174 = vperm.xlu0 %1173, %v319
      %v1175 = vpop.permute.xlu0 %1174
      %1177 = vset.pattern.permute.xlu0 6
      %1178 = vperm.xlu0 %1177, %v320
      %v1179 = vpop.permute.xlu0 %1178
      %1181 = vset.pattern.permute.xlu0 6
      %1182 = vperm.xlu0 %1181, %v321
      %v1183 = vpop.permute.xlu0 %1182
      %1185 = vset.pattern.permute.xlu0 6
      %1186 = vperm.xlu0 %1185, %v322
      %v1187 = vpop.permute.xlu0 %1186
      %v1197 = vunpack.c.l.b16 %v1145
      %v1198 = vunpack.c.l.b16 %v1146
      %v1199 = vunpack.c.l.b16 %v1147
      %v1200 = vunpack.c.l.b16 %v1148
      %v1201 = vunpack.c.l.b16 %v1149
      %v1202 = vunpack.c.l.b16 %v1150
      %v1203 = vunpack.c.l.b16 %v1151
      %v1204 = vunpack.c.l.b16 %v1152
      %v1205 = vpack.c.b16 %v1198, %v1197
      %v1206 = vpack.c.b16 %v1200, %v1199
      %v1207 = vpack.c.b16 %v1202, %v1201
      %v1208 = vpack.c.b16 %v1204, %v1203
      %v1210 = vsel %vm568, %v1205, 0
      %v1213 = vsel %vm568, %v1206, 0
      %v1216 = vsel %vm568, %v1207, 0
      %v1219 = vsel %vm568, %v1208, 0
      %1221 = vmatpush.bf16.msra.mxu0 0
      %1222 = vmatpush.bf16.msra.mxu0 0
      %1223 = vmatpush.bf16.msra.mxu0 0
      %1224 = vmatpush.bf16.msra.mxu0 0
      %1225 = vmatpush.bf16.msra.mxu0 0
      %1226 = vmatpush.bf16.msra.mxu0 0
      %1227 = vmatpush.bf16.msra.mxu0 %v1155
      %1228 = vmatpush.bf16.msra.mxu0 %v1153
      %1229 = vmatmul.bf16.gmra.mxu0 %v1210
      %v1230 = vpop.f32.mrf.mxu0
      %v1231 = vadd.f32 %v1159, %v1230
      %v1232 = vpop.f32.mrf.mxu0
      %v1233 = vadd.f32 %v1163, %v1232
      %1234 = vmatmul.bf16.gmra.mxu0 %v1213
      %v1235 = vpop.f32.mrf.mxu0
      %v1236 = vadd.f32 %v1167, %v1235
      %v1237 = vpop.f32.mrf.mxu0
      %v1238 = vadd.f32 %v1171, %v1237
      %1239 = vmatmul.bf16.gmra.mxu0 %v1216
      %v1240 = vpop.f32.mrf.mxu0
      %v1241 = vadd.f32 %v1175, %v1240
      %v1242 = vpop.f32.mrf.mxu0
      %v1243 = vadd.f32 %v1179, %v1242
      %1244 = vmatmul.bf16.gmra.mxu0 %v1219
      %v1245 = vpop.f32.mrf.mxu0
      %v1246 = vadd.f32 %v1183, %v1245
      %v1247 = vpop.f32.mrf.mxu0
      %v1248 = vadd.f32 %v1187, %v1247
      %1249 = vdwg.mxu0
      %1250 = vmatpush.bf16.msra.mxu0 0
      %1251 = vmatpush.bf16.msra.mxu0 0
      %1252 = vmatpush.bf16.msra.mxu0 0
      %1253 = vmatpush.bf16.msra.mxu0 0
      %1254 = vmatpush.bf16.msra.mxu0 0
      %1255 = vmatpush.bf16.msra.mxu0 0
      %1256 = vmatpush.bf16.msra.mxu0 %v1156
      %1257 = vmatpush.bf16.msra.mxu0 %v1154
      %1258 = vmatmul.bf16.gmra.mxu0 %v1210
      %v1259 = vpop.f32.mrf.mxu0
      %v1260 = vadd.f32 %v1159, %v1259
      %v1261 = vpop.f32.mrf.mxu0
      %v1262 = vadd.f32 %v1163, %v1261
      %1263 = vmatmul.bf16.gmra.mxu0 %v1213
      %v1264 = vpop.f32.mrf.mxu0
      %v1265 = vadd.f32 %v1167, %v1264
      %v1266 = vpop.f32.mrf.mxu0
      %v1267 = vadd.f32 %v1171, %v1266
      %1268 = vmatmul.bf16.gmra.mxu0 %v1216
      %v1269 = vpop.f32.mrf.mxu0
      %v1270 = vadd.f32 %v1175, %v1269
      %v1271 = vpop.f32.mrf.mxu0
      %v1272 = vadd.f32 %v1179, %v1271
      %1273 = vmatmul.bf16.gmra.mxu0 %v1219
      %v1274 = vpop.f32.mrf.mxu0
      %v1275 = vadd.f32 %v1183, %v1274
      %v1276 = vpop.f32.mrf.mxu0
      %v1277 = vadd.f32 %v1187, %v1276
      %1278 = vdwg.mxu0
      %v1279 = vmul.f32 %v1231, 0.5
      %v1280 = vmul.f32 %v1260, 0.5
      %v1281 = vmul.f32 %v1233, 0.5
      %v1282 = vmul.f32 %v1262, 0.5
      %v1283 = vmul.f32 %v1236, 0.5
      %v1284 = vmul.f32 %v1265, 0.5
      %v1285 = vmul.f32 %v1238, 0.5
      %v1286 = vmul.f32 %v1267, 0.5
      %v1287 = vmul.f32 %v1241, 0.5
      %v1288 = vmul.f32 %v1270, 0.5
      %v1289 = vmul.f32 %v1243, 0.5
      %v1290 = vmul.f32 %v1272, 0.5
      %v1291 = vmul.f32 %v1246, 0.5
      %v1292 = vmul.f32 %v1275, 0.5
      %v1293 = vmul.f32 %v1248, 0.5
      %v1294 = vmul.f32 %v1277, 0.5
      %v1295 = vtanh.pop %v1279
      %v1296 = vtanh.pop %v1280
      %v1297 = vtanh.pop %v1281
      %v1298 = vtanh.pop %v1282
      %v1299 = vtanh.pop %v1283
      %v1300 = vtanh.pop %v1284
      %v1301 = vtanh.pop %v1285
      %v1302 = vtanh.pop %v1286
      %v1303 = vtanh.pop %v1287
      %v1304 = vtanh.pop %v1288
      %v1305 = vtanh.pop %v1289
      %v1306 = vtanh.pop %v1290
      %v1307 = vtanh.pop %v1291
      %v1308 = vtanh.pop %v1292
      %v1309 = vtanh.pop %v1293
      %v1310 = vtanh.pop %v1294
      %v1311 = vadd.f32 %v1295, 1.0
      %v1312 = vadd.f32 %v1296, 1.0
      %v1313 = vadd.f32 %v1297, 1.0
      %v1314 = vadd.f32 %v1298, 1.0
      %v1315 = vadd.f32 %v1299, 1.0
      %v1316 = vadd.f32 %v1300, 1.0
      %v1317 = vadd.f32 %v1301, 1.0
      %v1318 = vadd.f32 %v1302, 1.0
      %v1319 = vadd.f32 %v1303, 1.0
      %v1320 = vadd.f32 %v1304, 1.0
      %v1321 = vadd.f32 %v1305, 1.0
      %v1322 = vadd.f32 %v1306, 1.0
      %v1323 = vadd.f32 %v1307, 1.0
      %v1324 = vadd.f32 %v1308, 1.0
      %v1325 = vadd.f32 %v1309, 1.0
      %v1326 = vadd.f32 %v1310, 1.0
      %v1327 = vmul.f32 %v1279, %v1311
      %v1328 = vmul.f32 %v1280, %v1312
      %v1329 = vmul.f32 %v1281, %v1313
      %v1330 = vmul.f32 %v1282, %v1314
      %v1331 = vmul.f32 %v1283, %v1315
      %v1332 = vmul.f32 %v1284, %v1316
      %v1333 = vmul.f32 %v1285, %v1317
      %v1334 = vmul.f32 %v1286, %v1318
      %v1335 = vmul.f32 %v1287, %v1319
      %v1336 = vmul.f32 %v1288, %v1320
      %v1337 = vmul.f32 %v1289, %v1321
      %v1338 = vmul.f32 %v1290, %v1322
      %v1339 = vmul.f32 %v1291, %v1323
      %v1340 = vmul.f32 %v1292, %v1324
      %v1341 = vmul.f32 %v1293, %v1325
      %v1342 = vmul.f32 %v1294, %v1326
      %v1343 = vld [vmem:[%s4] sm:$0xf]
      %v1344 = vld [vmem:[%s4 + $0x4] sm:$0xf]
      %v1345 = vld [vmem:[%s4 + $0x8] sm:$0xf]
      %v1346 = vld [vmem:[%s4 + $0xc] sm:$0xf]
      %v1347 = vpack.c.bf16 %v1329, %v1327
      %v1348 = vpack.c.bf16 %v1330, %v1328
      %v1349 = vpack.c.bf16 %v1333, %v1331
      %v1350 = vpack.c.bf16 %v1334, %v1332
      %v1351 = vpack.c.bf16 %v1337, %v1335
      %v1352 = vpack.c.bf16 %v1338, %v1336
      %v1353 = vpack.c.bf16 %v1341, %v1339
      %v1354 = vpack.c.bf16 %v1342, %v1340
      %1355 = vset.pattern.permute.xlu0 7
      %1356 = vperm.xlu0 %1355, %v315
      %v1357 = vpop.permute.xlu0 %1356
      %1359 = vset.pattern.permute.xlu0 7
      %1360 = vperm.xlu0 %1359, %v316
      %v1361 = vpop.permute.xlu0 %1360
      %1363 = vset.pattern.permute.xlu0 7
      %1364 = vperm.xlu0 %1363, %v317
      %v1365 = vpop.permute.xlu0 %1364
      %1367 = vset.pattern.permute.xlu0 7
      %1368 = vperm.xlu0 %1367, %v318
      %v1369 = vpop.permute.xlu0 %1368
      %v1375 = vunpack.c.l.b16 %v1343
      %v1376 = vunpack.c.l.b16 %v1344
      %v1377 = vunpack.c.l.b16 %v1345
      %v1378 = vunpack.c.l.b16 %v1346
      %v1379 = vpack.c.b16 %v1376, %v1375
      %v1380 = vpack.c.b16 %v1378, %v1377
      %vm1381 = vcmask 523264
      %v1383 = vsel %vm1381, %v1379, 0
      %v1386 = vsel %vm1381, %v1380, 0
      %1388 = vmatpush.bf16.msra.mxu0 0
      %1389 = vmatpush.bf16.msra.mxu0 0
      %1390 = vmatpush.bf16.msra.mxu0 0
      %1391 = vmatpush.bf16.msra.mxu0 0
      %1392 = vmatpush.bf16.msra.mxu0 %v1353
      %1393 = vmatpush.bf16.msra.mxu0 %v1351
      %1394 = vmatpush.bf16.msra.mxu0 %v1349
      %1395 = vmatpush.bf16.msra.mxu0 %v1347
      %1396 = vmatmul.bf16.gmra.mxu0 %v1383
      %v1397 = vpop.f32.mrf.mxu0
      %v1398 = vadd.f32 %v1357, %v1397
      %v1399 = vpop.f32.mrf.mxu0
      %v1400 = vadd.f32 %v1361, %v1399
      %1401 = vmatmul.bf16.gmra.mxu0 %v1386
      %v1402 = vpop.f32.mrf.mxu0
      %v1403 = vadd.f32 %v1365, %v1402
      %v1404 = vpop.f32.mrf.mxu0
      %v1405 = vadd.f32 %v1369, %v1404
      %1406 = vdwg.mxu0
      %1407 = vmatpush.bf16.msra.mxu0 0
      %1408 = vmatpush.bf16.msra.mxu0 0
      %1409 = vmatpush.bf16.msra.mxu0 0
      %1410 = vmatpush.bf16.msra.mxu0 0
      %1411 = vmatpush.bf16.msra.mxu0 %v1354
      %1412 = vmatpush.bf16.msra.mxu0 %v1352
      %1413 = vmatpush.bf16.msra.mxu0 %v1350
      %1414 = vmatpush.bf16.msra.mxu0 %v1348
      %1415 = vmatmul.bf16.gmra.mxu0 %v1383
      %v1416 = vpop.f32.mrf.mxu0
      %v1417 = vadd.f32 %v1357, %v1416
      %v1418 = vpop.f32.mrf.mxu0
      %v1419 = vadd.f32 %v1361, %v1418
      %1420 = vmatmul.bf16.gmra.mxu0 %v1386
      %v1421 = vpop.f32.mrf.mxu0
      %v1422 = vadd.f32 %v1365, %v1421
      %v1423 = vpop.f32.mrf.mxu0
      %v1424 = vadd.f32 %v1369, %v1423
      %1425 = vdwg.mxu0
      %v1426 = vadd.f32 %v1008, %v1398
      %v1427 = vadd.f32 %v1009, %v1417
      %v1428 = vadd.f32 %v1010, %v1400
      %v1429 = vadd.f32 %v1011, %v1419
      %v1430 = vadd.f32 %v1012, %v1403
      %v1431 = vadd.f32 %v1013, %v1422
      %v1432 = vadd.f32 %v1014, %v1405
      %v1433 = vadd.f32 %v1015, %v1424
      %1434 = vst [vmem:[%s305] sm:$0xff] %v1426
      %1435 = vst [vmem:[%s305 + $0x8] sm:$0xff] %v1427
      %1436 = vst [vmem:[%s305 + $0x10] sm:$0xff] %v1428
      %1437 = vst [vmem:[%s305 + $0x18] sm:$0xff] %v1429
      %1438 = vst [vmem:[%s305 + $0x20] sm:$0xff] %v1430
      %1439 = vst [vmem:[%s305 + $0x28] sm:$0xff] %v1431
      %1440 = vst [vmem:[%s305 + $0x30] sm:$0xff] %v1432
      %1441 = vst [vmem:[%s305 + $0x38] sm:$0xff] %v1433
      %p1442 = scmp.lt.s32.totalorder %s19, 1
      %s1443 = scalar_select %p1442, %s19, 1
      %s1444 = smul.addr %s1443, 8
      %s1445 = smul.addr %s1444, 8
      %s1446 = scalar_lea.vmem %s8, %s1445
      // Predicated region
      $region53: #{linear_attn_ffn.1} parent=51 // pred_check
        %p1447 = pneg %p210
      $region54: #{linear_attn_ffn.1} parent=51 // pred_check_branch
        %1449 = sbr.rel (%p1447) target = $region56
      $region55: #{linear_attn_ffn.1} parent=51 // pred_region
        _
      $region56: #{linear_attn_ffn.1} parent=51 // pred_fallthru
        _
    $region52: #{linear_attn_ffn.1} parent=5 // pred_fallthru
      _
    %p1450 = scmp.le.s32.totalorder 2, %s14
    // Predicated region
    $region57: #{linear_attn_ffn.1} parent=5 // pred_check
      %p1451 = pneg %p1450
    $region58: #{linear_attn_ffn.1} parent=5 // pred_check_branch
      %1453 = sbr.rel (%p1451) target = $region60
    $region59: #{linear_attn_ffn.1} parent=5 // pred_region
      %s1454 = ssub.s32 %s14, 2
      // Predicated region
      $region61: #{linear_attn_ffn.1} parent=59 // pred_check
        %p1455 = pneg %p216
      $region62: #{linear_attn_ffn.1} parent=59 // pred_check_branch
        %1457 = sbr.rel (%p1455) target = $region64
      $region63: #{linear_attn_ffn.1} parent=59 // pred_region
        %p1458 = scmp.lt.s32.totalorder %s20, 1
        %s1459 = scalar_select %p1458, %s20, 1
        %s1460 = smul.addr %s1459, 8
        %s1461 = smul.addr %s1460, 8
        %s1462 = scalar_lea.vmem %s8, %s1461
      $region64: #{linear_attn_ffn.1} parent=59 // pred_fallthru
        _
    $region60: #{linear_attn_ffn.1} parent=5 // pred_fallthru
      _
  $region6: #{linear_attn_ffn.1} parent=0 // loop_footer
    %s18 = sadd.s32 1, %s14
  $region7: #{linear_attn_ffn.1} parent=0 // loop_footer_branch
    %13 = sbr.rel target = $region3
  $region8: #{linear_attn_ffn.1} parent=0 // loop_exit
    _

</llo_original>
